<compile_context>
chip_gen: v5e
topology: v5e:2x2
jax: 0.10.0
libtpu: 0.0.40
codegen_flags: <defaults>
</compile_context>

<pallas_src>
import functools

import numpy as np

import jax
import jax.numpy as jnp
from jax import lax
from jax.experimental import pallas as pl
from jax.experimental.pallas import tpu as pltpu


# ----------------------------- model config -------------------------------
CFG = dict(
    img_size=16,
    patch_size=8,
    in_chans=3,
    embed_dim=128,
    depth=2,
    num_heads=4,
    mlp_ratio=4,
    n_classes=10,
    n_classes_pad=128,   # head output padded to a full 128-lane vreg
    tokens_pad=8,        # 5 tokens (4 patches + CLS) padded to 8 sublanes
)

LN_EPS = 1e-6
NEG_INF = -1e30
VMEM_LIMIT = 32 * 1024 * 1024   # safe on v5e/v6e (128 MiB) and v7x (64 MiB)


def _layernorm(x, g, b, eps=LN_EPS):
    """Row-wise LayerNorm in f32 (VPU/EUP work stays f32 for v5e)."""
    x = x.astype(jnp.float32)
    mean = jnp.mean(x, axis=-1, keepdims=True)
    var = jnp.mean(jnp.square(x - mean), axis=-1, keepdims=True)
    return (x - mean) * lax.rsqrt(var + eps) * g + b


# --------------------- single fused ViT forward kernel ---------------------

def _vit_kernel(patches_ref, add_ref, mask_ref, pw_ref,
                ln1g_ref, ln1b_ref, qkvw_ref, qkvb_ref,
                projw_ref, projb_ref, ln2g_ref, ln2b_ref,
                fc1w_ref, fc1b_ref, fc2w_ref, fc2b_ref,
                normg_ref, normb_ref, headw_ref, headb_ref,
                o_ref, x_ref,
                *, num_heads, head_dim, n_pad, batch):
    D = num_heads * head_dim
    d = pl.program_id(0)

    # ---- step 0: fused patch embed (patch matmul + CLS/pos/conv-bias slab) --
    @pl.when(d == 0)
    def _():
        p16 = patches_ref[...].astype(jnp.bfloat16)            # (M, C*P*P)
        x_ref[...] = (jnp.dot(p16, pw_ref[...],
                              preferred_element_type=jnp.float32)
                      + add_ref[...])                           # (M, D) f32

    x = x_ref[...]                     # token slab, resident in VMEM scratch
    mask_bias = mask_ref[...]          # (M, M): 0 same-batch valid key, -1e30

    # ---- attention: LN1 -> qkv -> per-head SDPA (block-diag over batch) ----
    h1 = _layernorm(x, ln1g_ref[...], ln1b_ref[...])
    qkv = jnp.dot(h1.astype(jnp.bfloat16), qkvw_ref[...],
                  preferred_element_type=jnp.float32) + qkvb_ref[...]
    qkv16 = qkv.astype(jnp.bfloat16)                            # one slab cast
    scale = head_dim ** -0.5

    head_outs = []
    for h in range(num_heads):                                  # static, H=4
        lo = h * head_dim
        q_h = qkv16[:, lo:lo + head_dim]                        # (M, Dh)
        k_h = qkv16[:, D + lo:D + lo + head_dim]
        v_h = qkv16[:, 2 * D + lo:2 * D + lo + head_dim]
        s = lax.dot_general(q_h, k_h, (((1,), (1,)), ((), ())),
                            preferred_element_type=jnp.float32)  # (M, M)
        s = s * scale + mask_bias
        s = s - jnp.max(s, axis=-1, keepdims=True)
        p = jnp.exp(s)
        p = p / jnp.sum(p, axis=-1, keepdims=True)              # exact divide
        head_outs.append(jnp.dot(p.astype(jnp.bfloat16), v_h,
                                 preferred_element_type=jnp.float32))
    attn = jnp.concatenate(head_outs, axis=-1)                  # (M, D)

    # single full-K output projection (+ residual + bias)
    x1 = x + jnp.dot(attn.astype(jnp.bfloat16), projw_ref[...],
                     preferred_element_type=jnp.float32) + projb_ref[...]

    # ---- MLP: LN2 -> fc1 + GELU -> fc2 (+residual) ----
    h2 = _layernorm(x1, ln2g_ref[...], ln2b_ref[...])
    h2 = jnp.dot(h2.astype(jnp.bfloat16), fc1w_ref[...],
                 preferred_element_type=jnp.float32) + fc1b_ref[...]
    h2 = jax.nn.gelu(h2, approximate=True)                      # tanh GELU
    x2 = x1 + jnp.dot(h2.astype(jnp.bfloat16), fc2w_ref[...],
                      preferred_element_type=jnp.float32) + fc2b_ref[...]
    x_ref[...] = x2                                             # carry slab

    # ---- last step: final LayerNorm on CLS rows + classification head ----
    @pl.when(d == pl.num_programs(0) - 1)
    def _():
        cls = jnp.concatenate(
            [x2[b * n_pad:b * n_pad + 1, :] for b in range(batch)], axis=0)
        hcls = _layernorm(cls, normg_ref[...], normb_ref[...])  # (B, D)
        o_ref[...] = (jnp.dot(hcls.astype(jnp.bfloat16), headw_ref[...],
                              preferred_element_type=jnp.float32)
                      + headb_ref[...]).astype(o_ref.dtype)


# ----------------------------- ViT model glue ------------------------------

def init_params(key, cfg):
    P, C, D = cfg["patch_size"], cfg["in_chans"], cfg["embed_dim"]
    n_patches = (cfg["img_size"] // P) ** 2
    n_tokens = n_patches + 1
    hidden = cfg["mlp_ratio"] * D
    depth = cfg["depth"]
    nc, nc_pad = cfg["n_classes"], cfg["n_classes_pad"]

    keys = iter(jax.random.split(key, 32))

    def nrm(shape, std=0.02):
        return (std * jax.random.normal(next(keys), shape)).astype(jnp.float32)

    head_w = jnp.zeros((D, nc_pad), jnp.float32).at[:, :nc].set(nrm((D, nc)))

    return {
        # Conv2d(3, D, k=P, s=P) expressed as a (C*P*P, D) matmul weight (bf16)
        "patch_w": nrm((C * P * P, D)).astype(jnp.bfloat16),
        "patch_b": jnp.zeros((D,), jnp.float32),
        "cls_token": nrm((1, 1, D)),
        "pos_embed": nrm((1, n_tokens, D)),
        # per-block weights stacked along a leading depth axis
        "ln1_g": jnp.ones((depth, 1, D), jnp.float32),
        "ln1_b": jnp.zeros((depth, 1, D), jnp.float32),
        "qkv_w": nrm((depth, D, 3 * D)).astype(jnp.bfloat16),
        "qkv_b": jnp.zeros((depth, 1, 3 * D), jnp.float32),
        "proj_w": nrm((depth, D, D)).astype(jnp.bfloat16),
        "proj_b": jnp.zeros((depth, 1, D), jnp.float32),
        "ln2_g": jnp.ones((depth, 1, D), jnp.float32),
        "ln2_b": jnp.zeros((depth, 1, D), jnp.float32),
        "fc1_w": nrm((depth, D, hidden)).astype(jnp.bfloat16),
        "fc1_b": jnp.zeros((depth, 1, hidden), jnp.float32),
        "fc2_w": nrm((depth, hidden, D)).astype(jnp.bfloat16),
        "fc2_b": jnp.zeros((depth, 1, D), jnp.float32),
        # final norm + head (classes padded to 128 output lanes)
        "norm_g": jnp.ones((1, D), jnp.float32),
        "norm_b": jnp.zeros((1, D), jnp.float32),
        "head_w": head_w.astype(jnp.bfloat16),
        "head_b": jnp.zeros((1, nc_pad), jnp.float32),
    }


def vit_forward(params, x, cfg):
    """Equivalent of ViTBase16.forward: self.model(x[:, :3, :, :])."""
    P, D, H = cfg["patch_size"], cfg["embed_dim"], cfg["num_heads"]
    n_pad, depth = cfg["tokens_pad"], cfg["depth"]

    x = x[:, :3, :, :]                                   # NCHW channel slice
    B, C_in, Him, Wim = x.shape
    gh, gw = Him // P, Wim // P
    n_patches = gh * gw
    n_tokens = n_patches + 1
    M = B * n_pad
    Kp = C_in * P * P

    # patchify (pure layout, once per forward, outside the kernel)
    patches = x.reshape(B, C_in, gh, P, gw, P)
    patches = patches.transpose(0, 2, 4, 1, 3, 5).reshape(B, n_patches, Kp)
    # row 0 per batch = CLS slot (zeros); trailing rows = sublane padding
    patches = jnp.pad(patches, ((0, 0), (1, n_pad - n_tokens), (0, 0)))
    patches = patches.reshape(M, Kp)                     # batch folded into rows

    # fused additive slab: cls_token + pos_embed + conv bias, tiled over batch
    pos = params["pos_embed"][0]                          # (n_tokens, D)
    add0 = params["cls_token"][0, 0] + pos[0]
    addp = pos[1:] + params["patch_b"][None, :]
    add_slab = jnp.concatenate(
        [add0[None, :], addp, jnp.zeros((n_pad - n_tokens, D), jnp.float32)],
        axis=0)
    add_slab = jnp.tile(add_slab, (B, 1))                 # (M, D)

    # static block-diagonal attention mask: same-batch AND valid-token keys
    rid = np.arange(M) // n_pad
    cid = np.arange(M) // n_pad
    ctok = np.arange(M) % n_pad
    valid = (rid[:, None] == cid[None, :]) & (ctok[None, :] < n_tokens)
    mask_bias = jnp.asarray(np.where(valid, 0.0, NEG_INF), dtype=jnp.float32)

    C = params["head_w"].shape[1]
    hidden = params["fc1_w"].shape[2]

    def fixed(shape):
        return pl.BlockSpec(shape, lambda d, _n=len(shape): (0,) * _n)

    def perblk(shape):
        return pl.BlockSpec((None,) + shape,
                            lambda d, _n=len(shape): (d,) + (0,) * _n)

    kern = functools.partial(_vit_kernel, num_heads=H, head_dim=D // H,
                             n_pad=n_pad, batch=B)

    logits = pl.pallas_call(
        kern,
        out_shape=jax.ShapeDtypeStruct((B, C), jnp.float32),
        grid=(depth,),
        in_specs=[
            fixed((M, Kp)),                      # patches
            fixed((M, D)),                       # add slab
            fixed((M, M)),                       # attention mask bias
            fixed((Kp, D)),                      # patch_w
            perblk((1, D)), perblk((1, D)),      # ln1 g/b
            perblk((D, 3 * D)), perblk((1, 3 * D)),   # qkv w/b
            perblk((D, D)), perblk((1, D)),      # proj w/b
            perblk((1, D)), perblk((1, D)),      # ln2 g/b
            perblk((D, hidden)), perblk((1, hidden)),  # fc1 w/b
            perblk((hidden, D)), perblk((1, D)),       # fc2 w/b
            fixed((1, D)), fixed((1, D)),        # final norm g/b
            fixed((D, C)), fixed((1, C)),        # head w/b
        ],
        out_specs=fixed((B, C)),
        scratch_shapes=[pltpu.VMEM((M, D), jnp.float32)],   # resident tokens
        compiler_params=pltpu.CompilerParams(
            dimension_semantics=("arbitrary",),   # depth steps carry the slab
            vmem_limit_bytes=VMEM_LIMIT,
        ),
    )(patches, add_slab, mask_bias, params["patch_w"],
      params["ln1_g"], params["ln1_b"], params["qkv_w"], params["qkv_b"],
      params["proj_w"], params["proj_b"], params["ln2_g"], params["ln2_b"],
      params["fc1_w"], params["fc1_b"], params["fc2_w"], params["fc2_b"],
      params["norm_g"], params["norm_b"], params["head_w"], params["head_b"])

    return logits[:, :cfg["n_classes"]]                    # (B, n_classes)


# --------------------------------- main ------------------------------------

if __name__ == "__main__":
    key = jax.random.PRNGKey(0)
    k_x, k_p = jax.random.split(key)

    # input matches PyTorch NCHW with 4 channels (forward slices to first 3)
    x = jax.random.normal(k_x, (2, 4, CFG["img_size"], CFG["img_size"]),
                          dtype=jnp.float32)
    params = init_params(k_p, CFG)

    fwd = jax.jit(functools.partial(vit_forward, cfg=CFG))
    out = jax.block_until_ready(fwd(params, x))

    assert out.shape == (2, CFG["n_classes"]), out.shape
    assert bool(jnp.all(jnp.isfinite(out)))
    print("KERNEL_OK")
</pallas_src>

<mosaic_0001>
module attributes {stable_mosaic.version = 11 : i64} {
  func.func @_vit_kernel(%arg0: i32, %arg1: memref<16x192xf32, #tpu.memory_space<vmem>>, %arg2: memref<16x128xf32, #tpu.memory_space<vmem>>, %arg3: memref<16x16xf32, #tpu.memory_space<vmem>>, %arg4: memref<192x128xbf16, #tpu.memory_space<vmem>>, %arg5: memref<1x1x128xf32, #tpu.memory_space<vmem>>, %arg6: memref<1x1x128xf32, #tpu.memory_space<vmem>>, %arg7: memref<1x128x384xbf16, #tpu.memory_space<vmem>>, %arg8: memref<1x1x384xf32, #tpu.memory_space<vmem>>, %arg9: memref<1x128x128xbf16, #tpu.memory_space<vmem>>, %arg10: memref<1x1x128xf32, #tpu.memory_space<vmem>>, %arg11: memref<1x1x128xf32, #tpu.memory_space<vmem>>, %arg12: memref<1x1x128xf32, #tpu.memory_space<vmem>>, %arg13: memref<1x128x512xbf16, #tpu.memory_space<vmem>>, %arg14: memref<1x1x512xf32, #tpu.memory_space<vmem>>, %arg15: memref<1x512x128xbf16, #tpu.memory_space<vmem>>, %arg16: memref<1x1x128xf32, #tpu.memory_space<vmem>>, %arg17: memref<1x128xf32, #tpu.memory_space<vmem>>, %arg18: memref<1x128xf32, #tpu.memory_space<vmem>>, %arg19: memref<128x128xbf16, #tpu.memory_space<vmem>>, %arg20: memref<1x128xf32, #tpu.memory_space<vmem>>, %arg21: memref<2x128xf32, #tpu.memory_space<vmem>>, %arg22: memref<16x128xf32, #tpu.memory_space<vmem>>) attributes {dimension_semantics = [#tpu.dimension_semantics<arbitrary>], iteration_bounds = array<i64: 2>, scalar_prefetch = 0 : i64, scratch_operands = 1 : i64, tpu.core_type = #tpu.core_type<tc>, window_params = [{pipeline_mode = #tpu.pipeline_mode<synchronous>, transform_indices = @transform_0, window_bounds = array<i64: 16, 192>}, {pipeline_mode = #tpu.pipeline_mode<synchronous>, transform_indices = @transform_1, window_bounds = array<i64: 16, 128>}, {pipeline_mode = #tpu.pipeline_mode<synchronous>, transform_indices = @transform_2, window_bounds = array<i64: 16, 16>}, {pipeline_mode = #tpu.pipeline_mode<synchronous>, transform_indices = @transform_3, window_bounds = array<i64: 192, 128>}, {transform_indices = @transform_4, window_bounds = array<i64: 1, 1, 128>}, {transform_indices = @transform_5, window_bounds = array<i64: 1, 1, 128>}, {transform_indices = @transform_6, window_bounds = array<i64: 1, 128, 384>}, {transform_indices = @transform_7, window_bounds = array<i64: 1, 1, 384>}, {transform_indices = @transform_8, window_bounds = array<i64: 1, 128, 128>}, {transform_indices = @transform_9, window_bounds = array<i64: 1, 1, 128>}, {transform_indices = @transform_10, window_bounds = array<i64: 1, 1, 128>}, {transform_indices = @transform_11, window_bounds = array<i64: 1, 1, 128>}, {transform_indices = @transform_12, window_bounds = array<i64: 1, 128, 512>}, {transform_indices = @transform_13, window_bounds = array<i64: 1, 1, 512>}, {transform_indices = @transform_14, window_bounds = array<i64: 1, 512, 128>}, {transform_indices = @transform_15, window_bounds = array<i64: 1, 1, 128>}, {pipeline_mode = #tpu.pipeline_mode<synchronous>, transform_indices = @transform_16, window_bounds = array<i64: 1, 128>}, {pipeline_mode = #tpu.pipeline_mode<synchronous>, transform_indices = @transform_17, window_bounds = array<i64: 1, 128>}, {pipeline_mode = #tpu.pipeline_mode<synchronous>, transform_indices = @transform_18, window_bounds = array<i64: 128, 128>}, {pipeline_mode = #tpu.pipeline_mode<synchronous>, transform_indices = @transform_19, window_bounds = array<i64: 1, 128>}, {pipeline_mode = #tpu.pipeline_mode<synchronous>, transform_indices = @transform_20, window_bounds = array<i64: 2, 128>}]} {
    %c0_i32 = arith.constant 0 : i32
    %0 = arith.cmpi eq, %arg0, %c0_i32 : i32
    %1 = arith.extui %0 : i1 to i32
    %c0_i32_0 = arith.constant 0 : i32
    %2 = arith.cmpi ne, %1, %c0_i32_0 : i32
    scf.if %2 {
      %c0_80 = arith.constant 0 : index
      %c0_81 = arith.constant 0 : index
      %182 = vector.load %arg1[%c0_80, %c0_81] : memref<16x192xf32, #tpu.memory_space<vmem>>, vector<16x192xf32>
      %183 = arith.truncf %182 : vector<16x192xf32> to vector<16x192xbf16>
      %c0_82 = arith.constant 0 : index
      %c0_83 = arith.constant 0 : index
      %184 = vector.load %arg4[%c0_82, %c0_83] : memref<192x128xbf16, #tpu.memory_space<vmem>>, vector<192x128xbf16>
      %cst_84 = arith.constant dense<0.000000e+00> : vector<16x128xf32>
      %185 = tpu.matmul %183, %184, %cst_84 {dimension_numbers = #tpu.dot_dimension_numbers<[1], [0], [0], [1], [0, 0, 1, 1], [], []>} : vector<16x192xbf16>, vector<192x128xbf16>, vector<16x128xf32> -> vector<16x128xf32>
      %c0_85 = arith.constant 0 : index
      %c0_86 = arith.constant 0 : index
      %186 = vector.load %arg2[%c0_85, %c0_86] : memref<16x128xf32, #tpu.memory_space<vmem>>, vector<16x128xf32>
      %187 = arith.addf %185, %186 : vector<16x128xf32>
      %c0_87 = arith.constant 0 : index
      %c0_88 = arith.constant 0 : index
      %188 = vector.load %arg22[%c0_87, %c0_88] : memref<16x128xf32, #tpu.memory_space<vmem>>, vector<16x128xf32>
      tpu.vector_store %arg22[%c0_87, %c0_88], %187 {strides = array<i32>} : memref<16x128xf32, #tpu.memory_space<vmem>>, vector<16x128xf32>,
    } else {
    }
    %c0 = arith.constant 0 : index
    %c0_1 = arith.constant 0 : index
    %3 = vector.load %arg22[%c0, %c0_1] : memref<16x128xf32, #tpu.memory_space<vmem>>, vector<16x128xf32>
    %c0_2 = arith.constant 0 : index
    %c0_3 = arith.constant 0 : index
    %4 = vector.load %arg3[%c0_2, %c0_3] : memref<16x16xf32, #tpu.memory_space<vmem>>, vector<16x16xf32>
    %c0_4 = arith.constant 0 : index
    %c0_5 = arith.constant 0 : index
    %c0_6 = arith.constant 0 : index
    %5 = vector.load %arg5[%c0_4, %c0_5, %c0_6] : memref<1x1x128xf32, #tpu.memory_space<vmem>>, vector<1x1x128xf32>
    %6 = vector.shape_cast %5 : vector<1x1x128xf32> to vector<1x128xf32>
    %c0_7 = arith.constant 0 : index
    %c0_8 = arith.constant 0 : index
    %c0_9 = arith.constant 0 : index
    %7 = vector.load %arg6[%c0_7, %c0_8, %c0_9] : memref<1x1x128xf32, #tpu.memory_space<vmem>>, vector<1x1x128xf32>
    %8 = vector.shape_cast %7 : vector<1x1x128xf32> to vector<1x128xf32>
    %cst = arith.constant dense<0.000000e+00> : vector<16xf32>
    %9 = vector.multi_reduction <add>, %3, %cst [1] : vector<16x128xf32> to vector<16xf32>
    %10 = vector.shape_cast %9 : vector<16xf32> to vector<16x1xf32>
    %cst_10 = arith.constant 1.280000e+02 : f32
    %11 = vector.broadcast %cst_10 : f32 to vector<16x1xf32>
    %12 = arith.divf %10, %11 : vector<16x1xf32>
    %13 = vector.broadcast %12 : vector<16x1xf32> to vector<16x128xf32>
    %14 = arith.subf %3, %13 : vector<16x128xf32>
    %15 = arith.mulf %14, %14 : vector<16x128xf32>
    %cst_11 = arith.constant dense<0.000000e+00> : vector<16xf32>
    %16 = vector.multi_reduction <add>, %15, %cst_11 [1] : vector<16x128xf32> to vector<16xf32>
    %17 = vector.shape_cast %16 : vector<16xf32> to vector<16x1xf32>
    %cst_12 = arith.constant 1.280000e+02 : f32
    %18 = vector.broadcast %cst_12 : f32 to vector<16x1xf32>
    %19 = arith.divf %17, %18 : vector<16x1xf32>
    %20 = vector.broadcast %12 : vector<16x1xf32> to vector<16x128xf32>
    %21 = arith.subf %3, %20 : vector<16x128xf32>
    %cst_13 = arith.constant 9.99999997E-7 : f32
    %22 = vector.broadcast %cst_13 : f32 to vector<16x1xf32>
    %23 = arith.addf %19, %22 : vector<16x1xf32>
    %24 = math.rsqrt %23 : vector<16x1xf32>
    %25 = vector.broadcast %24 : vector<16x1xf32> to vector<16x128xf32>
    %26 = arith.mulf %21, %25 : vector<16x128xf32>
    %27 = vector.broadcast %6 : vector<1x128xf32> to vector<16x128xf32>
    %28 = arith.mulf %26, %27 : vector<16x128xf32>
    %29 = vector.broadcast %8 : vector<1x128xf32> to vector<16x128xf32>
    %30 = arith.addf %28, %29 : vector<16x128xf32>
    %31 = arith.truncf %30 : vector<16x128xf32> to vector<16x128xbf16>
    %c0_14 = arith.constant 0 : index
    %c0_15 = arith.constant 0 : index
    %c0_16 = arith.constant 0 : index
    %32 = vector.load %arg7[%c0_14, %c0_15, %c0_16] : memref<1x128x384xbf16, #tpu.memory_space<vmem>>, vector<1x128x384xbf16>
    %33 = vector.shape_cast %32 : vector<1x128x384xbf16> to vector<128x384xbf16>
    %cst_17 = arith.constant dense<0.000000e+00> : vector<16x384xf32>
    %34 = tpu.matmul %31, %33, %cst_17 {dimension_numbers = #tpu.dot_dimension_numbers<[1], [0], [0], [1], [0, 0, 1, 1], [], []>} : vector<16x128xbf16>, vector<128x384xbf16>, vector<16x384xf32> -> vector<16x384xf32>
    %c0_18 = arith.constant 0 : index
    %c0_19 = arith.constant 0 : index
    %c0_20 = arith.constant 0 : index
    %35 = vector.load %arg8[%c0_18, %c0_19, %c0_20] : memref<1x1x384xf32, #tpu.memory_space<vmem>>, vector<1x1x384xf32>
    %36 = vector.shape_cast %35 : vector<1x1x384xf32> to vector<1x384xf32>
    %37 = vector.broadcast %36 : vector<1x384xf32> to vector<16x384xf32>
    %38 = arith.addf %34, %37 : vector<16x384xf32>
    %39 = arith.truncf %38 : vector<16x384xf32> to vector<16x384xbf16>
    %40 = vector.extract_strided_slice %39 {offsets = [0, 0], sizes = [16, 32], strides = [1, 1]} : vector<16x384xbf16> to vector<16x32xbf16>
    %41 = vector.extract_strided_slice %39 {offsets = [0, 128], sizes = [16, 32], strides = [1, 1]} : vector<16x384xbf16> to vector<16x32xbf16>
    %42 = vector.extract_strided_slice %39 {offsets = [0, 256], sizes = [16, 32], strides = [1, 1]} : vector<16x384xbf16> to vector<16x32xbf16>
    %cst_21 = arith.constant dense<0.000000e+00> : vector<16x16xf32>
    %43 = tpu.matmul %40, %41, %cst_21 {dimension_numbers = #tpu.dot_dimension_numbers<[1], [1], [0], [0], [0, 0, 1, 0], [], []>} : vector<16x32xbf16>, vector<16x32xbf16>, vector<16x16xf32> -> vector<16x16xf32>
    %cst_22 = arith.constant 0.176776692 : f32
    %44 = vector.broadcast %cst_22 : f32 to vector<16x16xf32>
    %45 = arith.mulf %43, %44 : vector<16x16xf32>
    %46 = arith.addf %45, %4 : vector<16x16xf32>
    %cst_23 = arith.constant dense<0xFF800000> : vector<16xf32>
    %47 = vector.multi_reduction <maximumf>, %46, %cst_23 [1] : vector<16x16xf32> to vector<16xf32>
    %48 = vector.shape_cast %47 : vector<16xf32> to vector<16x1xf32>
    %49 = vector.broadcast %48 : vector<16x1xf32> to vector<16x16xf32>
    %50 = arith.subf %46, %49 : vector<16x16xf32>
    %51 = math.exp %50 : vector<16x16xf32>
    %cst_24 = arith.constant dense<0.000000e+00> : vector<16xf32>
    %52 = vector.multi_reduction <add>, %51, %cst_24 [1] : vector<16x16xf32> to vector<16xf32>
    %53 = vector.shape_cast %52 : vector<16xf32> to vector<16x1xf32>
    %54 = vector.broadcast %53 : vector<16x1xf32> to vector<16x16xf32>
    %55 = arith.divf %51, %54 : vector<16x16xf32>
    %56 = arith.truncf %55 : vector<16x16xf32> to vector<16x16xbf16>
    %cst_25 = arith.constant dense<0.000000e+00> : vector<16x32xf32>
    %57 = tpu.matmul %56, %42, %cst_25 {dimension_numbers = #tpu.dot_dimension_numbers<[1], [0], [0], [1], [0, 0, 1, 1], [], []>} : vector<16x16xbf16>, vector<16x32xbf16>, vector<16x32xf32> -> vector<16x32xf32>
    %58 = vector.extract_strided_slice %39 {offsets = [0, 32], sizes = [16, 32], strides = [1, 1]} : vector<16x384xbf16> to vector<16x32xbf16>
    %59 = vector.extract_strided_slice %39 {offsets = [0, 160], sizes = [16, 32], strides = [1, 1]} : vector<16x384xbf16> to vector<16x32xbf16>
    %60 = vector.extract_strided_slice %39 {offsets = [0, 288], sizes = [16, 32], strides = [1, 1]} : vector<16x384xbf16> to vector<16x32xbf16>
    %cst_26 = arith.constant dense<0.000000e+00> : vector<16x16xf32>
    %61 = tpu.matmul %58, %59, %cst_26 {dimension_numbers = #tpu.dot_dimension_numbers<[1], [1], [0], [0], [0, 0, 1, 0], [], []>} : vector<16x32xbf16>, vector<16x32xbf16>, vector<16x16xf32> -> vector<16x16xf32>
    %cst_27 = arith.constant 0.176776692 : f32
    %62 = vector.broadcast %cst_27 : f32 to vector<16x16xf32>
    %63 = arith.mulf %61, %62 : vector<16x16xf32>
    %64 = arith.addf %63, %4 : vector<16x16xf32>
    %cst_28 = arith.constant dense<0xFF800000> : vector<16xf32>
    %65 = vector.multi_reduction <maximumf>, %64, %cst_28 [1] : vector<16x16xf32> to vector<16xf32>
    %66 = vector.shape_cast %65 : vector<16xf32> to vector<16x1xf32>
    %67 = vector.broadcast %66 : vector<16x1xf32> to vector<16x16xf32>
    %68 = arith.subf %64, %67 : vector<16x16xf32>
    %69 = math.exp %68 : vector<16x16xf32>
    %cst_29 = arith.constant dense<0.000000e+00> : vector<16xf32>
    %70 = vector.multi_reduction <add>, %69, %cst_29 [1] : vector<16x16xf32> to vector<16xf32>
    %71 = vector.shape_cast %70 : vector<16xf32> to vector<16x1xf32>
    %72 = vector.broadcast %71 : vector<16x1xf32> to vector<16x16xf32>
    %73 = arith.divf %69, %72 : vector<16x16xf32>
    %74 = arith.truncf %73 : vector<16x16xf32> to vector<16x16xbf16>
    %cst_30 = arith.constant dense<0.000000e+00> : vector<16x32xf32>
    %75 = tpu.matmul %74, %60, %cst_30 {dimension_numbers = #tpu.dot_dimension_numbers<[1], [0], [0], [1], [0, 0, 1, 1], [], []>} : vector<16x16xbf16>, vector<16x32xbf16>, vector<16x32xf32> -> vector<16x32xf32>
    %76 = vector.extract_strided_slice %39 {offsets = [0, 64], sizes = [16, 32], strides = [1, 1]} : vector<16x384xbf16> to vector<16x32xbf16>
    %77 = vector.extract_strided_slice %39 {offsets = [0, 192], sizes = [16, 32], strides = [1, 1]} : vector<16x384xbf16> to vector<16x32xbf16>
    %78 = vector.extract_strided_slice %39 {offsets = [0, 320], sizes = [16, 32], strides = [1, 1]} : vector<16x384xbf16> to vector<16x32xbf16>
    %cst_31 = arith.constant dense<0.000000e+00> : vector<16x16xf32>
    %79 = tpu.matmul %76, %77, %cst_31 {dimension_numbers = #tpu.dot_dimension_numbers<[1], [1], [0], [0], [0, 0, 1, 0], [], []>} : vector<16x32xbf16>, vector<16x32xbf16>, vector<16x16xf32> -> vector<16x16xf32>
    %cst_32 = arith.constant 0.176776692 : f32
    %80 = vector.broadcast %cst_32 : f32 to vector<16x16xf32>
    %81 = arith.mulf %79, %80 : vector<16x16xf32>
    %82 = arith.addf %81, %4 : vector<16x16xf32>
    %cst_33 = arith.constant dense<0xFF800000> : vector<16xf32>
    %83 = vector.multi_reduction <maximumf>, %82, %cst_33 [1] : vector<16x16xf32> to vector<16xf32>
    %84 = vector.shape_cast %83 : vector<16xf32> to vector<16x1xf32>
    %85 = vector.broadcast %84 : vector<16x1xf32> to vector<16x16xf32>
    %86 = arith.subf %82, %85 : vector<16x16xf32>
    %87 = math.exp %86 : vector<16x16xf32>
    %cst_34 = arith.constant dense<0.000000e+00> : vector<16xf32>
    %88 = vector.multi_reduction <add>, %87, %cst_34 [1] : vector<16x16xf32> to vector<16xf32>
    %89 = vector.shape_cast %88 : vector<16xf32> to vector<16x1xf32>
    %90 = vector.broadcast %89 : vector<16x1xf32> to vector<16x16xf32>
    %91 = arith.divf %87, %90 : vector<16x16xf32>
    %92 = arith.truncf %91 : vector<16x16xf32> to vector<16x16xbf16>
    %cst_35 = arith.constant dense<0.000000e+00> : vector<16x32xf32>
    %93 = tpu.matmul %92, %78, %cst_35 {dimension_numbers = #tpu.dot_dimension_numbers<[1], [0], [0], [1], [0, 0, 1, 1], [], []>} : vector<16x16xbf16>, vector<16x32xbf16>, vector<16x32xf32> -> vector<16x32xf32>
    %94 = vector.extract_strided_slice %39 {offsets = [0, 96], sizes = [16, 32], strides = [1, 1]} : vector<16x384xbf16> to vector<16x32xbf16>
    %95 = vector.extract_strided_slice %39 {offsets = [0, 224], sizes = [16, 32], strides = [1, 1]} : vector<16x384xbf16> to vector<16x32xbf16>
    %96 = vector.extract_strided_slice %39 {offsets = [0, 352], sizes = [16, 32], strides = [1, 1]} : vector<16x384xbf16> to vector<16x32xbf16>
    %cst_36 = arith.constant dense<0.000000e+00> : vector<16x16xf32>
    %97 = tpu.matmul %94, %95, %cst_36 {dimension_numbers = #tpu.dot_dimension_numbers<[1], [1], [0], [0], [0, 0, 1, 0], [], []>} : vector<16x32xbf16>, vector<16x32xbf16>, vector<16x16xf32> -> vector<16x16xf32>
    %cst_37 = arith.constant 0.176776692 : f32
    %98 = vector.broadcast %cst_37 : f32 to vector<16x16xf32>
    %99 = arith.mulf %97, %98 : vector<16x16xf32>
    %100 = arith.addf %99, %4 : vector<16x16xf32>
    %cst_38 = arith.constant dense<0xFF800000> : vector<16xf32>
    %101 = vector.multi_reduction <maximumf>, %100, %cst_38 [1] : vector<16x16xf32> to vector<16xf32>
    %102 = vector.shape_cast %101 : vector<16xf32> to vector<16x1xf32>
    %103 = vector.broadcast %102 : vector<16x1xf32> to vector<16x16xf32>
    %104 = arith.subf %100, %103 : vector<16x16xf32>
    %105 = math.exp %104 : vector<16x16xf32>
    %cst_39 = arith.constant dense<0.000000e+00> : vector<16xf32>
    %106 = vector.multi_reduction <add>, %105, %cst_39 [1] : vector<16x16xf32> to vector<16xf32>
    %107 = vector.shape_cast %106 : vector<16xf32> to vector<16x1xf32>
    %108 = vector.broadcast %107 : vector<16x1xf32> to vector<16x16xf32>
    %109 = arith.divf %105, %108 : vector<16x16xf32>
    %110 = arith.truncf %109 : vector<16x16xf32> to vector<16x16xbf16>
    %cst_40 = arith.constant dense<0.000000e+00> : vector<16x32xf32>
    %111 = tpu.matmul %110, %96, %cst_40 {dimension_numbers = #tpu.dot_dimension_numbers<[1], [0], [0], [1], [0, 0, 1, 1], [], []>} : vector<16x16xbf16>, vector<16x32xbf16>, vector<16x32xf32> -> vector<16x32xf32>
    %112 = tpu.concatenate %57, %75, %93, %111 in 1 : vector<16x32xf32>, vector<16x32xf32>, vector<16x32xf32>, vector<16x32xf32> -> vector<16x128xf32>
    %113 = arith.truncf %112 : vector<16x128xf32> to vector<16x128xbf16>
    %c0_41 = arith.constant 0 : index
    %c0_42 = arith.constant 0 : index
    %c0_43 = arith.constant 0 : index
    %114 = vector.load %arg9[%c0_41, %c0_42, %c0_43] : memref<1x128x128xbf16, #tpu.memory_space<vmem>>, vector<1x128x128xbf16>
    %115 = vector.shape_cast %114 : vector<1x128x128xbf16> to vector<128x128xbf16>
    %cst_44 = arith.constant dense<0.000000e+00> : vector<16x128xf32>
    %116 = tpu.matmul %113, %115, %cst_44 {dimension_numbers = #tpu.dot_dimension_numbers<[1], [0], [0], [1], [0, 0, 1, 1], [], []>} : vector<16x128xbf16>, vector<128x128xbf16>, vector<16x128xf32> -> vector<16x128xf32>
    %117 = arith.addf %3, %116 : vector<16x128xf32>
    %c0_45 = arith.constant 0 : index
    %c0_46 = arith.constant 0 : index
    %c0_47 = arith.constant 0 : index
    %118 = vector.load %arg10[%c0_45, %c0_46, %c0_47] : memref<1x1x128xf32, #tpu.memory_space<vmem>>, vector<1x1x128xf32>
    %119 = vector.shape_cast %118 : vector<1x1x128xf32> to vector<1x128xf32>
    %120 = vector.broadcast %119 : vector<1x128xf32> to vector<16x128xf32>
    %121 = arith.addf %117, %120 : vector<16x128xf32>
    %c0_48 = arith.constant 0 : index
    %c0_49 = arith.constant 0 : index
    %c0_50 = arith.constant 0 : index
    %122 = vector.load %arg11[%c0_48, %c0_49, %c0_50] : memref<1x1x128xf32, #tpu.memory_space<vmem>>, vector<1x1x128xf32>
    %123 = vector.shape_cast %122 : vector<1x1x128xf32> to vector<1x128xf32>
    %c0_51 = arith.constant 0 : index
    %c0_52 = arith.constant 0 : index
    %c0_53 = arith.constant 0 : index
    %124 = vector.load %arg12[%c0_51, %c0_52, %c0_53] : memref<1x1x128xf32, #tpu.memory_space<vmem>>, vector<1x1x128xf32>
    %125 = vector.shape_cast %124 : vector<1x1x128xf32> to vector<1x128xf32>
    %cst_54 = arith.constant dense<0.000000e+00> : vector<16xf32>
    %126 = vector.multi_reduction <add>, %121, %cst_54 [1] : vector<16x128xf32> to vector<16xf32>
    %127 = vector.shape_cast %126 : vector<16xf32> to vector<16x1xf32>
    %cst_55 = arith.constant 1.280000e+02 : f32
    %128 = vector.broadcast %cst_55 : f32 to vector<16x1xf32>
    %129 = arith.divf %127, %128 : vector<16x1xf32>
    %130 = vector.broadcast %129 : vector<16x1xf32> to vector<16x128xf32>
    %131 = arith.subf %121, %130 : vector<16x128xf32>
    %132 = arith.mulf %131, %131 : vector<16x128xf32>
    %cst_56 = arith.constant dense<0.000000e+00> : vector<16xf32>
    %133 = vector.multi_reduction <add>, %132, %cst_56 [1] : vector<16x128xf32> to vector<16xf32>
    %134 = vector.shape_cast %133 : vector<16xf32> to vector<16x1xf32>
    %cst_57 = arith.constant 1.280000e+02 : f32
    %135 = vector.broadcast %cst_57 : f32 to vector<16x1xf32>
    %136 = arith.divf %134, %135 : vector<16x1xf32>
    %137 = vector.broadcast %129 : vector<16x1xf32> to vector<16x128xf32>
    %138 = arith.subf %121, %137 : vector<16x128xf32>
    %cst_58 = arith.constant 9.99999997E-7 : f32
    %139 = vector.broadcast %cst_58 : f32 to vector<16x1xf32>
    %140 = arith.addf %136, %139 : vector<16x1xf32>
    %141 = math.rsqrt %140 : vector<16x1xf32>
    %142 = vector.broadcast %141 : vector<16x1xf32> to vector<16x128xf32>
    %143 = arith.mulf %138, %142 : vector<16x128xf32>
    %144 = vector.broadcast %123 : vector<1x128xf32> to vector<16x128xf32>
    %145 = arith.mulf %143, %144 : vector<16x128xf32>
    %146 = vector.broadcast %125 : vector<1x128xf32> to vector<16x128xf32>
    %147 = arith.addf %145, %146 : vector<16x128xf32>
    %148 = arith.truncf %147 : vector<16x128xf32> to vector<16x128xbf16>
    %c0_59 = arith.constant 0 : index
    %c0_60 = arith.constant 0 : index
    %c0_61 = arith.constant 0 : index
    %149 = vector.load %arg13[%c0_59, %c0_60, %c0_61] : memref<1x128x512xbf16, #tpu.memory_space<vmem>>, vector<1x128x512xbf16>
    %150 = vector.shape_cast %149 : vector<1x128x512xbf16> to vector<128x512xbf16>
    %cst_62 = arith.constant dense<0.000000e+00> : vector<16x512xf32>
    %151 = tpu.matmul %148, %150, %cst_62 {dimension_numbers = #tpu.dot_dimension_numbers<[1], [0], [0], [1], [0, 0, 1, 1], [], []>} : vector<16x128xbf16>, vector<128x512xbf16>, vector<16x512xf32> -> vector<16x512xf32>
    %c0_63 = arith.constant 0 : index
    %c0_64 = arith.constant 0 : index
    %c0_65 = arith.constant 0 : index
    %152 = vector.load %arg14[%c0_63, %c0_64, %c0_65] : memref<1x1x512xf32, #tpu.memory_space<vmem>>, vector<1x1x512xf32>
    %153 = vector.shape_cast %152 : vector<1x1x512xf32> to vector<1x512xf32>
    %154 = vector.broadcast %153 : vector<1x512xf32> to vector<16x512xf32>
    %155 = arith.addf %151, %154 : vector<16x512xf32>
    %156 = arith.mulf %155, %155 : vector<16x512xf32>
    %157 = arith.mulf %155, %156 : vector<16x512xf32>
    %cst_66 = arith.constant 4.471500e-02 : f32
    %158 = vector.broadcast %cst_66 : f32 to vector<16x512xf32>
    %159 = arith.mulf %158, %157 : vector<16x512xf32>
    %160 = arith.addf %155, %159 : vector<16x512xf32>
    %cst_67 = arith.constant 0.797884583 : f32
    %161 = vector.broadcast %cst_67 : f32 to vector<16x512xf32>
    %162 = arith.mulf %161, %160 : vector<16x512xf32>
    %163 = math.tanh %162 : vector<16x512xf32>
    %cst_68 = arith.constant 1.000000e+00 : f32
    %164 = vector.broadcast %cst_68 : f32 to vector<16x512xf32>
    %165 = arith.addf %164, %163 : vector<16x512xf32>
    %cst_69 = arith.constant 5.000000e-01 : f32
    %166 = vector.broadcast %cst_69 : f32 to vector<16x512xf32>
    %167 = arith.mulf %166, %165 : vector<16x512xf32>
    %168 = arith.mulf %155, %167 : vector<16x512xf32>
    %169 = arith.truncf %168 : vector<16x512xf32> to vector<16x512xbf16>
    %c0_70 = arith.constant 0 : index
    %c0_71 = arith.constant 0 : index
    %c0_72 = arith.constant 0 : index
    %170 = vector.load %arg15[%c0_70, %c0_71, %c0_72] : memref<1x512x128xbf16, #tpu.memory_space<vmem>>, vector<1x512x128xbf16>
    %171 = vector.shape_cast %170 : vector<1x512x128xbf16> to vector<512x128xbf16>
    %cst_73 = arith.constant dense<0.000000e+00> : vector<16x128xf32>
    %172 = tpu.matmul %169, %171, %cst_73 {dimension_numbers = #tpu.dot_dimension_numbers<[1], [0], [0], [1], [0, 0, 1, 1], [], []>} : vector<16x512xbf16>, vector<512x128xbf16>, vector<16x128xf32> -> vector<16x128xf32>
    %173 = arith.addf %121, %172 : vector<16x128xf32>
    %c0_74 = arith.constant 0 : index
    %c0_75 = arith.constant 0 : index
    %c0_76 = arith.constant 0 : index
    %174 = vector.load %arg16[%c0_74, %c0_75, %c0_76] : memref<1x1x128xf32, #tpu.memory_space<vmem>>, vector<1x1x128xf32>
    %175 = vector.shape_cast %174 : vector<1x1x128xf32> to vector<1x128xf32>
    %176 = vector.broadcast %175 : vector<1x128xf32> to vector<16x128xf32>
    %177 = arith.addf %173, %176 : vector<16x128xf32>
    %c0_77 = arith.constant 0 : index
    %c0_78 = arith.constant 0 : index
    %178 = vector.load %arg22[%c0_77, %c0_78] : memref<16x128xf32, #tpu.memory_space<vmem>>, vector<16x128xf32>
    tpu.vector_store %arg22[%c0_77, %c0_78], %177 {strides = array<i32>} : memref<16x128xf32, #tpu.memory_space<vmem>>, vector<16x128xf32>,
    %c1_i32 = arith.constant 1 : i32
    %179 = arith.cmpi eq, %arg0, %c1_i32 : i32
    %180 = arith.extui %179 : i1 to i32
    %c0_i32_79 = arith.constant 0 : i32
    %181 = arith.cmpi ne, %180, %c0_i32_79 : i32
    scf.if %181 {
      %182 = vector.extract_strided_slice %177 {offsets = [0, 0], sizes = [1, 128], strides = [1, 1]} : vector<16x128xf32> to vector<1x128xf32>
      %183 = vector.extract_strided_slice %177 {offsets = [8, 0], sizes = [1, 128], strides = [1, 1]} : vector<16x128xf32> to vector<1x128xf32>
      %184 = tpu.concatenate %182, %183 in 0 : vector<1x128xf32>, vector<1x128xf32> -> vector<2x128xf32>
      %c0_80 = arith.constant 0 : index
      %c0_81 = arith.constant 0 : index
      %185 = vector.load %arg17[%c0_80, %c0_81] : memref<1x128xf32, #tpu.memory_space<vmem>>, vector<1x128xf32>
      %c0_82 = arith.constant 0 : index
      %c0_83 = arith.constant 0 : index
      %186 = vector.load %arg18[%c0_82, %c0_83] : memref<1x128xf32, #tpu.memory_space<vmem>>, vector<1x128xf32>
      %cst_84 = arith.constant dense<0.000000e+00> : vector<2xf32>
      %187 = vector.multi_reduction <add>, %184, %cst_84 [1] : vector<2x128xf32> to vector<2xf32>
      %188 = vector.shape_cast %187 : vector<2xf32> to vector<2x1xf32>
      %cst_85 = arith.constant 1.280000e+02 : f32
      %189 = vector.broadcast %cst_85 : f32 to vector<2x1xf32>
      %190 = arith.divf %188, %189 : vector<2x1xf32>
      %191 = vector.broadcast %190 : vector<2x1xf32> to vector<2x128xf32>
      %192 = arith.subf %184, %191 : vector<2x128xf32>
      %193 = arith.mulf %192, %192 : vector<2x128xf32>
      %cst_86 = arith.constant dense<0.000000e+00> : vector<2xf32>
      %194 = vector.multi_reduction <add>, %193, %cst_86 [1] : vector<2x128xf32> to vector<2xf32>
      %195 = vector.shape_cast %194 : vector<2xf32> to vector<2x1xf32>
      %cst_87 = arith.constant 1.280000e+02 : f32
      %196 = vector.broadcast %cst_87 : f32 to vector<2x1xf32>
      %197 = arith.divf %195, %196 : vector<2x1xf32>
      %198 = vector.broadcast %190 : vector<2x1xf32> to vector<2x128xf32>
      %199 = arith.subf %184, %198 : vector<2x128xf32>
      %cst_88 = arith.constant 9.99999997E-7 : f32
      %200 = vector.broadcast %cst_88 : f32 to vector<2x1xf32>
      %201 = arith.addf %197, %200 : vector<2x1xf32>
      %202 = math.rsqrt %201 : vector<2x1xf32>
      %203 = vector.broadcast %202 : vector<2x1xf32> to vector<2x128xf32>
      %204 = arith.mulf %199, %203 : vector<2x128xf32>
      %205 = vector.broadcast %185 : vector<1x128xf32> to vector<2x128xf32>
      %206 = arith.mulf %204, %205 : vector<2x128xf32>
      %207 = vector.broadcast %186 : vector<1x128xf32> to vector<2x128xf32>
      %208 = arith.addf %206, %207 : vector<2x128xf32>
      %209 = arith.truncf %208 : vector<2x128xf32> to vector<2x128xbf16>
      %c0_89 = arith.constant 0 : index
      %c0_90 = arith.constant 0 : index
      %210 = vector.load %arg19[%c0_89, %c0_90] : memref<128x128xbf16, #tpu.memory_space<vmem>>, vector<128x128xbf16>
      %cst_91 = arith.constant dense<0.000000e+00> : vector<2x128xf32>
      %211 = tpu.matmul %209, %210, %cst_91 {dimension_numbers = #tpu.dot_dimension_numbers<[1], [0], [0], [1], [0, 0, 1, 1], [], []>} : vector<2x128xbf16>, vector<128x128xbf16>, vector<2x128xf32> -> vector<2x128xf32>
      %c0_92 = arith.constant 0 : index
      %c0_93 = arith.constant 0 : index
      %212 = vector.load %arg20[%c0_92, %c0_93] : memref<1x128xf32, #tpu.memory_space<vmem>>, vector<1x128xf32>
      %213 = vector.broadcast %212 : vector<1x128xf32> to vector<2x128xf32>
      %214 = arith.addf %211, %213 : vector<2x128xf32>
      %c0_94 = arith.constant 0 : index
      %c0_95 = arith.constant 0 : index
      %215 = vector.load %arg21[%c0_94, %c0_95] : memref<2x128xf32, #tpu.memory_space<vmem>>, vector<2x128xf32>
      tpu.vector_store %arg21[%c0_94, %c0_95], %214 {strides = array<i32>} : memref<2x128xf32, #tpu.memory_space<vmem>>, vector<2x128xf32>,
    } else {
    }
    return
  }
  func.func @transform_0(%arg0: i32) -> (i32, i32) {
    %c0_i32 = arith.constant 0 : i32
    %c0_i32_0 = arith.constant 0 : i32
    %c0_i32_1 = arith.constant 0 : i32
    return %c0_i32, %c0_i32_0 : i32, i32
  }
  func.func @transform_1(%arg0: i32) -> (i32, i32) {
    %c0_i32 = arith.constant 0 : i32
    %c0_i32_0 = arith.constant 0 : i32
    %c0_i32_1 = arith.constant 0 : i32
    return %c0_i32, %c0_i32_0 : i32, i32
  }
  func.func @transform_2(%arg0: i32) -> (i32, i32) {
    %c0_i32 = arith.constant 0 : i32
    %c0_i32_0 = arith.constant 0 : i32
    %c0_i32_1 = arith.constant 0 : i32
    return %c0_i32, %c0_i32_0 : i32, i32
  }
  func.func @transform_3(%arg0: i32) -> (i32, i32) {
    %c0_i32 = arith.constant 0 : i32
    %c0_i32_0 = arith.constant 0 : i32
    %c0_i32_1 = arith.constant 0 : i32
    return %c0_i32, %c0_i32_0 : i32, i32
  }
  func.func @transform_4(%arg0: i32) -> (i32, i32, i32) {
    %c0_i32 = arith.constant 0 : i32
    %c0_i32_0 = arith.constant 0 : i32
    %c0_i32_1 = arith.constant 0 : i32
    return %arg0, %c0_i32, %c0_i32_0 : i32, i32, i32
  }
  func.func @transform_5(%arg0: i32) -> (i32, i32, i32) {
    %c0_i32 = arith.constant 0 : i32
    %c0_i32_0 = arith.constant 0 : i32
    %c0_i32_1 = arith.constant 0 : i32
    return %arg0, %c0_i32, %c0_i32_0 : i32, i32, i32
  }
  func.func @transform_6(%arg0: i32) -> (i32, i32, i32) {
    %c0_i32 = arith.constant 0 : i32
    %c0_i32_0 = arith.constant 0 : i32
    %c0_i32_1 = arith.constant 0 : i32
    return %arg0, %c0_i32, %c0_i32_0 : i32, i32, i32
  }
  func.func @transform_7(%arg0: i32) -> (i32, i32, i32) {
    %c0_i32 = arith.constant 0 : i32
    %c0_i32_0 = arith.constant 0 : i32
    %c0_i32_1 = arith.constant 0 : i32
    return %arg0, %c0_i32, %c0_i32_0 : i32, i32, i32
  }
  func.func @transform_8(%arg0: i32) -> (i32, i32, i32) {
    %c0_i32 = arith.constant 0 : i32
    %c0_i32_0 = arith.constant 0 : i32
    %c0_i32_1 = arith.constant 0 : i32
    return %arg0, %c0_i32, %c0_i32_0 : i32, i32, i32
  }
  func.func @transform_9(%arg0: i32) -> (i32, i32, i32) {
    %c0_i32 = arith.constant 0 : i32
    %c0_i32_0 = arith.constant 0 : i32
    %c0_i32_1 = arith.constant 0 : i32
    return %arg0, %c0_i32, %c0_i32_0 : i32, i32, i32
  }
  func.func @transform_10(%arg0: i32) -> (i32, i32, i32) {
    %c0_i32 = arith.constant 0 : i32
    %c0_i32_0 = arith.constant 0 : i32
    %c0_i32_1 = arith.constant 0 : i32
    return %arg0, %c0_i32, %c0_i32_0 : i32, i32, i32
  }
  func.func @transform_11(%arg0: i32) -> (i32, i32, i32) {
    %c0_i32 = arith.constant 0 : i32
    %c0_i32_0 = arith.constant 0 : i32
    %c0_i32_1 = arith.constant 0 : i32
    return %arg0, %c0_i32, %c0_i32_0 : i32, i32, i32
  }
  func.func @transform_12(%arg0: i32) -> (i32, i32, i32) {
    %c0_i32 = arith.constant 0 : i32
    %c0_i32_0 = arith.constant 0 : i32
    %c0_i32_1 = arith.constant 0 : i32
    return %arg0, %c0_i32, %c0_i32_0 : i32, i32, i32
  }
  func.func @transform_13(%arg0: i32) -> (i32, i32, i32) {
    %c0_i32 = arith.constant 0 : i32
    %c0_i32_0 = arith.constant 0 : i32
    %c0_i32_1 = arith.constant 0 : i32
    return %arg0, %c0_i32, %c0_i32_0 : i32, i32, i32
  }
  func.func @transform_14(%arg0: i32) -> (i32, i32, i32) {
    %c0_i32 = arith.constant 0 : i32
    %c0_i32_0 = arith.constant 0 : i32
    %c0_i32_1 = arith.constant 0 : i32
    return %arg0, %c0_i32, %c0_i32_0 : i32, i32, i32
  }
  func.func @transform_15(%arg0: i32) -> (i32, i32, i32) {
    %c0_i32 = arith.constant 0 : i32
    %c0_i32_0 = arith.constant 0 : i32
    %c0_i32_1 = arith.constant 0 : i32
    return %arg0, %c0_i32, %c0_i32_0 : i32, i32, i32
  }
  func.func @transform_16(%arg0: i32) -> (i32, i32) {
    %c0_i32 = arith.constant 0 : i32
    %c0_i32_0 = arith.constant 0 : i32
    %c0_i32_1 = arith.constant 0 : i32
    return %c0_i32, %c0_i32_0 : i32, i32
  }
  func.func @transform_17(%arg0: i32) -> (i32, i32) {
    %c0_i32 = arith.constant 0 : i32
    %c0_i32_0 = arith.constant 0 : i32
    %c0_i32_1 = arith.constant 0 : i32
    return %c0_i32, %c0_i32_0 : i32, i32
  }
  func.func @transform_18(%arg0: i32) -> (i32, i32) {
    %c0_i32 = arith.constant 0 : i32
    %c0_i32_0 = arith.constant 0 : i32
    %c0_i32_1 = arith.constant 0 : i32
    return %c0_i32, %c0_i32_0 : i32, i32
  }
  func.func @transform_19(%arg0: i32) -> (i32, i32) {
    %c0_i32 = arith.constant 0 : i32
    %c0_i32_0 = arith.constant 0 : i32
    %c0_i32_1 = arith.constant 0 : i32
    return %c0_i32, %c0_i32_0 : i32, i32
  }
  func.func @transform_20(%arg0: i32) -> (i32, i32) {
    %c0_i32 = arith.constant 0 : i32
    %c0_i32_0 = arith.constant 0 : i32
    %c0_i32_1 = arith.constant 0 : i32
    return %c0_i32, %c0_i32_0 : i32, i32
  }
}

</mosaic_0001>

<llo_original>
// kernel: vit_forward.1
$region0: #{vit_forward.1}
  #allocation0 [shape = 'u32[]', space=smem, size = 0x4, offset = 0x4, fixed_abs, tag = 'smem constant byte address 0x4 - core index']
  #allocation1 [shape = 'u32[72,128]{1,0:T(1,128)}', space=vmem, size = 0x9000, scoped, tag = 'internal scratch']
  #allocation2 [shape = 'f32[16,128]{1,0:T(8,128)}', space=vmem, size = 0x2000, scoped, tag = 'scratch operand']
  %s0 = inlined_call_operand.vmem [shape: f32[16,192], index: 0, kind: input, shape index: {}]
  %s1 = inlined_call_operand.vmem [shape: f32[16,128], index: 1, kind: input, shape index: {}]
  %s2 = inlined_call_operand.vmem [shape: f32[16,16], index: 2, kind: input, shape index: {}]
  %s3 = inlined_call_operand.vmem [shape: bf16[192,128], index: 3, kind: input, shape index: {}]
  %s4 = inlined_call_operand.vmem [shape: f32[2,1,128], index: 4, kind: input, shape index: {}]
  %s5 = inlined_call_operand.vmem [shape: f32[2,1,128], index: 5, kind: input, shape index: {}]
  %s6 = inlined_call_operand.vmem [shape: bf16[2,128,384], index: 6, kind: input, shape index: {}]
  %s7 = inlined_call_operand.vmem [shape: f32[2,1,384], index: 7, kind: input, shape index: {}]
  %s8 = inlined_call_operand.hbm [shape: bf16[2,128,128], index: 8, kind: input, shape index: {}]
  %s9 = inlined_call_operand.vmem [shape: f32[2,1,128], index: 9, kind: input, shape index: {}]
  %s10 = inlined_call_operand.vmem [shape: f32[2,1,128], index: 10, kind: input, shape index: {}]
  %s11 = inlined_call_operand.vmem [shape: f32[2,1,128], index: 11, kind: input, shape index: {}]
  %s12 = inlined_call_operand.vmem [shape: bf16[2,128,512], index: 12, kind: input, shape index: {}]
  %s13 = inlined_call_operand.vmem [shape: f32[2,1,512], index: 13, kind: input, shape index: {}]
  %s14 = inlined_call_operand.hbm [shape: bf16[2,512,128], index: 14, kind: input, shape index: {}]
  %s15 = inlined_call_operand.vmem [shape: f32[2,1,128], index: 15, kind: input, shape index: {}]
  %s16 = inlined_call_operand.vmem [shape: f32[1,128], index: 16, kind: input, shape index: {}]
  %s17 = inlined_call_operand.vmem [shape: f32[1,128], index: 17, kind: input, shape index: {}]
  %s18 = inlined_call_operand.hbm [shape: bf16[128,128], index: 18, kind: input, shape index: {}]
  %s19 = inlined_call_operand.vmem [shape: f32[1,128], index: 19, kind: input, shape index: {}]
  %s20 = inlined_call_operand.hbm [shape: f32[2,128], index: 20, kind: output, shape index: {}]
  %s21 = sld [smem:[#allocation0]]
  $region133: #{vit_forward.1} parent=0
    _
  %s23 = ssub.s32 1, %s21
  %s24 = scalar_select 0, %s23, %s21
  $region1: #{vit_forward.1} parent=0
    #allocation3 [shape = 'u8[65536]{0}', space=vmem, size = 0x10000, scoped, tag = 'input window, operand 8']
    #allocation4 [shape = 's32[2]{0}', space=sflag, size = 0x8, scoped, tag = 'scoped memory for vit_forward.1']
    #allocation5 [shape = 's32[2]{0}', space=sflag, size = 0x8, scoped, tag = 'scoped memory for vit_forward.1']
    #allocation6 [shape = 'u8[262144]{0}', space=vmem, size = 0x40000, scoped, tag = 'input window, operand 14']
    #allocation7 [shape = 's32[2]{0}', space=sflag, size = 0x8, scoped, tag = 'scoped memory for vit_forward.1']
    #allocation8 [shape = 'u8[32768]{0}', space=vmem, size = 0x8000, scoped, tag = 'input window, operand 18, single buffered']
    #allocation9 [shape = 'u8[1024]{0}', space=vmem, size = 0x400, scoped, tag = 'output window, operand 0, single buffered']
    %25 = vsyncpa [#allocation4], 0
    %s26 = scalar_lea.sflag [#allocation4], 1
    %27 = vsyncpa %s26, 0
    %28 = vsyncpa [#allocation7], 0
    %s29 = scalar_lea.sflag [#allocation7], 1
    %30 = vsyncpa %s29, 0
    %31 = vsyncpa [#allocation5], 0
    loop: start=0, step=1, limit=4
    $region2: #{vit_forward.1} parent=1 // loop_pre_header
      _
    $region3: #{vit_forward.1} parent=1 // loop_header
      %s33 = sphi 0, %s37
      %p34 = scmp.ge.s32.totalorder %s33, 4
      %s41 = sphi 0, %s41
      %s43 = sphi 0, %s41
      %s44 = sphi 0, %s43
      %s58 = sphi 0, %s44
      %s62 = sphi 0, %s62
      %s64 = sphi 0, %s62
      %s65 = sphi 0, %s64
      %s79 = sphi 0, %s65
      %s83 = sphi 0, %s83
      %s85 = sphi 0, %s83
      %s86 = sphi 0, %s85
      %s100 = sphi 0, %s86
      %s104 = sphi 0, %s104
      %s106 = sphi 0, %s104
      %s107 = sphi 0, %s106
      %s121 = sphi 0, %s107
      %s127 = sphi 0, %s129
      %s130 = sphi 0, %s127
      %s131 = sphi 0, %s130
      %s147 = sphi 0, %s131
      %s153 = sphi 0, %s155
      %s156 = sphi 0, %s153
      %s157 = sphi 0, %s156
      %s173 = sphi 0, %s157
      %s179 = sphi 0, %s181
      %s182 = sphi 0, %s179
      %s183 = sphi 0, %s182
      %s199 = sphi 0, %s183
      %s205 = sphi 0, %s207
      %s208 = sphi 0, %s205
      %s209 = sphi 0, %s208
      %s225 = sphi 0, %s209
      %s231 = sphi 0, %s233
      %s234 = sphi 0, %s231
      %s235 = sphi 0, %s234
      %s251 = sphi 0, %s235
      %s257 = sphi 0, %s259
      %s260 = sphi 0, %s257
      %s261 = sphi 0, %s260
      %s277 = sphi 0, %s261
      %s283 = sphi 0, %s285
      %s286 = sphi 0, %s283
      %s287 = sphi 0, %s286
      %s303 = sphi 0, %s287
      %s309 = sphi 0, %s311
      %s312 = sphi 0, %s309
      %s313 = sphi 0, %s312
      %s329 = sphi 0, %s313
      %s335 = sphi 0, %s337
      %s338 = sphi 0, %s335
      %s339 = sphi 0, %s338
      %s355 = sphi 0, %s339
      %s361 = sphi 0, %s363
      %s364 = sphi 0, %s361
      %s365 = sphi 0, %s364
      %s381 = sphi 0, %s365
      %s387 = sphi 0, %s389
      %s390 = sphi 0, %s387
      %s391 = sphi 0, %s390
      %s407 = sphi 0, %s391
      %s413 = sphi 0, %s415
      %s416 = sphi 0, %s413
      %s417 = sphi 0, %s416
      %s433 = sphi 0, %s417
      %s437 = sphi 0, %s437
      %s439 = sphi 0, %s437
      %s440 = sphi 0, %s439
      %s454 = sphi 0, %s440
      %s458 = sphi 0, %s458
      %s460 = sphi 0, %s458
      %s461 = sphi 0, %s460
      %s475 = sphi 0, %s461
      %s479 = sphi 0, %s479
      %s481 = sphi 0, %s479
      %s482 = sphi 0, %s481
      %s496 = sphi 0, %s482
      %s500 = sphi 0, %s500
      %s502 = sphi 0, %s500
      %s503 = sphi 0, %s502
      %s517 = sphi 0, %s503
      %s521 = sphi 0, %s521
      %s523 = sphi 0, %s521
      %s524 = sphi 0, %s523
      %s538 = sphi 0, %s524
    $region4: #{vit_forward.1} parent=1 // loop_header_branch
      %36 = sbr.rel (%p34) target = $region8
    $region5: #{vit_forward.1} parent=1 // loop_body
      %s38 = ssub.s32 %s33, 1
      %s39 = ssub.s32 %s33, 2
      %s40 = sadd.s32 %s33, 1
      %s42 = sadd.s32 %s41, 1
      %p45 = scmp.eq.s32.totalorder %s33, 1
      %p46 = scmp.ne.s32.totalorder %s41, %s43
      %p47 = scmp.eq.s32.totalorder %s33, 0
      %p48 = por %p46, %p47
      %p49 = scmp.ne.s32.totalorder %s41, %s43
      %p50 = scmp.eq.s32.totalorder %s38, 1
      %p51 = por %p49, %p50
      %p52 = scmp.ne.s32.totalorder %s43, %s44
      %p53 = scmp.eq.s32.totalorder %s38, 0
      %p54 = por %p52, %p53
      %p55 = scmp.ne.s32.totalorder %s43, %s44
      %p56 = scmp.eq.s32.totalorder %s39, 1
      %p57 = por %p55, %p56
      %p59 = scmp.ne.s32.totalorder %s44, %s58
      %p60 = scmp.eq.s32.totalorder %s39, 0
      %p61 = por %p59, %p60
      %s63 = sadd.s32 %s62, 1
      %p66 = scmp.eq.s32.totalorder %s33, 1
      %p67 = scmp.ne.s32.totalorder %s62, %s64
      %p68 = scmp.eq.s32.totalorder %s33, 0
      %p69 = por %p67, %p68
      %p70 = scmp.ne.s32.totalorder %s62, %s64
      %p71 = scmp.eq.s32.totalorder %s38, 1
      %p72 = por %p70, %p71
      %p73 = scmp.ne.s32.totalorder %s64, %s65
      %p74 = scmp.eq.s32.totalorder %s38, 0
      %p75 = por %p73, %p74
      %p76 = scmp.ne.s32.totalorder %s64, %s65
      %p77 = scmp.eq.s32.totalorder %s39, 1
      %p78 = por %p76, %p77
      %p80 = scmp.ne.s32.totalorder %s65, %s79
      %p81 = scmp.eq.s32.totalorder %s39, 0
      %p82 = por %p80, %p81
      %s84 = sadd.s32 %s83, 1
      %p87 = scmp.eq.s32.totalorder %s33, 1
      %p88 = scmp.ne.s32.totalorder %s83, %s85
      %p89 = scmp.eq.s32.totalorder %s33, 0
      %p90 = por %p88, %p89
      %p91 = scmp.ne.s32.totalorder %s83, %s85
      %p92 = scmp.eq.s32.totalorder %s38, 1
      %p93 = por %p91, %p92
      %p94 = scmp.ne.s32.totalorder %s85, %s86
      %p95 = scmp.eq.s32.totalorder %s38, 0
      %p96 = por %p94, %p95
      %p97 = scmp.ne.s32.totalorder %s85, %s86
      %p98 = scmp.eq.s32.totalorder %s39, 1
      %p99 = por %p97, %p98
      %p101 = scmp.ne.s32.totalorder %s86, %s100
      %p102 = scmp.eq.s32.totalorder %s39, 0
      %p103 = por %p101, %p102
      %s105 = sadd.s32 %s104, 1
      %p108 = scmp.eq.s32.totalorder %s33, 1
      %p109 = scmp.ne.s32.totalorder %s104, %s106
      %p110 = scmp.eq.s32.totalorder %s33, 0
      %p111 = por %p109, %p110
      %p112 = scmp.ne.s32.totalorder %s104, %s106
      %p113 = scmp.eq.s32.totalorder %s38, 1
      %p114 = por %p112, %p113
      %p115 = scmp.ne.s32.totalorder %s106, %s107
      %p116 = scmp.eq.s32.totalorder %s38, 0
      %p117 = por %p115, %p116
      %p118 = scmp.ne.s32.totalorder %s106, %s107
      %p119 = scmp.eq.s32.totalorder %s39, 1
      %p120 = por %p118, %p119
      %p122 = scmp.ne.s32.totalorder %s107, %s121
      %p123 = scmp.eq.s32.totalorder %s39, 0
      %p124 = por %p122, %p123
      %s125 = ssub.s32 %s33, %s40
      %p126 = scmp.eq.s32.totalorder %s125, 0
      %s128 = sadd.s32 %s127, 1
      %s129 = scalar_select %p126, %s127, %s128
      %p132 = pneg %p126
      %p133 = scmp.eq.s32.totalorder %s33, 1
      %p134 = por %p132, %p133
      %p135 = scmp.ne.s32.totalorder %s127, %s130
      %p136 = scmp.eq.s32.totalorder %s33, 0
      %p137 = por %p135, %p136
      %p138 = scmp.ne.s32.totalorder %s127, %s130
      %p139 = scmp.eq.s32.totalorder %s38, 1
      %p140 = por %p138, %p139
      %p141 = scmp.ne.s32.totalorder %s130, %s131
      %p142 = scmp.eq.s32.totalorder %s38, 0
      %p143 = por %p141, %p142
      %p144 = scmp.ne.s32.totalorder %s130, %s131
      %p145 = scmp.eq.s32.totalorder %s39, 1
      %p146 = por %p144, %p145
      %p148 = scmp.ne.s32.totalorder %s131, %s147
      %p149 = scmp.eq.s32.totalorder %s39, 0
      %p150 = por %p148, %p149
      %s151 = ssub.s32 %s33, %s40
      %p152 = scmp.eq.s32.totalorder %s151, 0
      %s154 = sadd.s32 %s153, 1
      %s155 = scalar_select %p152, %s153, %s154
      %p158 = pneg %p152
      %p159 = scmp.eq.s32.totalorder %s33, 1
      %p160 = por %p158, %p159
      %p161 = scmp.ne.s32.totalorder %s153, %s156
      %p162 = scmp.eq.s32.totalorder %s33, 0
      %p163 = por %p161, %p162
      %p164 = scmp.ne.s32.totalorder %s153, %s156
      %p165 = scmp.eq.s32.totalorder %s38, 1
      %p166 = por %p164, %p165
      %p167 = scmp.ne.s32.totalorder %s156, %s157
      %p168 = scmp.eq.s32.totalorder %s38, 0
      %p169 = por %p167, %p168
      %p170 = scmp.ne.s32.totalorder %s156, %s157
      %p171 = scmp.eq.s32.totalorder %s39, 1
      %p172 = por %p170, %p171
      %p174 = scmp.ne.s32.totalorder %s157, %s173
      %p175 = scmp.eq.s32.totalorder %s39, 0
      %p176 = por %p174, %p175
      %s177 = ssub.s32 %s33, %s40
      %p178 = scmp.eq.s32.totalorder %s177, 0
      %s180 = sadd.s32 %s179, 1
      %s181 = scalar_select %p178, %s179, %s180
      %p184 = pneg %p178
      %p185 = scmp.eq.s32.totalorder %s33, 1
      %p186 = por %p184, %p185
      %p187 = scmp.ne.s32.totalorder %s179, %s182
      %p188 = scmp.eq.s32.totalorder %s33, 0
      %p189 = por %p187, %p188
      %p190 = scmp.ne.s32.totalorder %s179, %s182
      %p191 = scmp.eq.s32.totalorder %s38, 1
      %p192 = por %p190, %p191
      %p193 = scmp.ne.s32.totalorder %s182, %s183
      %p194 = scmp.eq.s32.totalorder %s38, 0
      %p195 = por %p193, %p194
      %p196 = scmp.ne.s32.totalorder %s182, %s183
      %p197 = scmp.eq.s32.totalorder %s39, 1
      %p198 = por %p196, %p197
      %p200 = scmp.ne.s32.totalorder %s183, %s199
      %p201 = scmp.eq.s32.totalorder %s39, 0
      %p202 = por %p200, %p201
      %s203 = ssub.s32 %s33, %s40
      %p204 = scmp.eq.s32.totalorder %s203, 0
      %s206 = sadd.s32 %s205, 1
      %s207 = scalar_select %p204, %s205, %s206
      %p210 = pneg %p204
      %p211 = scmp.eq.s32.totalorder %s33, 1
      %p212 = por %p210, %p211
      %p213 = scmp.ne.s32.totalorder %s205, %s208
      %p214 = scmp.eq.s32.totalorder %s33, 0
      %p215 = por %p213, %p214
      %p216 = scmp.ne.s32.totalorder %s205, %s208
      %p217 = scmp.eq.s32.totalorder %s38, 1
      %p218 = por %p216, %p217
      %p219 = scmp.ne.s32.totalorder %s208, %s209
      %p220 = scmp.eq.s32.totalorder %s38, 0
      %p221 = por %p219, %p220
      %p222 = scmp.ne.s32.totalorder %s208, %s209
      %p223 = scmp.eq.s32.totalorder %s39, 1
      %p224 = por %p222, %p223
      %p226 = scmp.ne.s32.totalorder %s209, %s225
      %p227 = scmp.eq.s32.totalorder %s39, 0
      %p228 = por %p226, %p227
      %s229 = ssub.s32 %s33, %s40
      %p230 = scmp.eq.s32.totalorder %s229, 0
      %s232 = sadd.s32 %s231, 1
      %s233 = scalar_select %p230, %s231, %s232
      %p236 = pneg %p230
      %p237 = scmp.eq.s32.totalorder %s33, 1
      %p238 = por %p236, %p237
      %p239 = scmp.ne.s32.totalorder %s231, %s234
      %p240 = scmp.eq.s32.totalorder %s33, 0
      %p241 = por %p239, %p240
      %p242 = scmp.ne.s32.totalorder %s231, %s234
      %p243 = scmp.eq.s32.totalorder %s38, 1
      %p244 = por %p242, %p243
      %p245 = scmp.ne.s32.totalorder %s234, %s235
      %p246 = scmp.eq.s32.totalorder %s38, 0
      %p247 = por %p245, %p246
      %p248 = scmp.ne.s32.totalorder %s234, %s235
      %p249 = scmp.eq.s32.totalorder %s39, 1
      %p250 = por %p248, %p249
      %p252 = scmp.ne.s32.totalorder %s235, %s251
      %p253 = scmp.eq.s32.totalorder %s39, 0
      %p254 = por %p252, %p253
      %s255 = ssub.s32 %s33, %s40
      %p256 = scmp.eq.s32.totalorder %s255, 0
      %s258 = sadd.s32 %s257, 1
      %s259 = scalar_select %p256, %s257, %s258
      %p262 = pneg %p256
      %p263 = scmp.eq.s32.totalorder %s33, 1
      %p264 = por %p262, %p263
      %p265 = scmp.ne.s32.totalorder %s257, %s260
      %p266 = scmp.eq.s32.totalorder %s33, 0
      %p267 = por %p265, %p266
      %p268 = scmp.ne.s32.totalorder %s257, %s260
      %p269 = scmp.eq.s32.totalorder %s38, 1
      %p270 = por %p268, %p269
      %p271 = scmp.ne.s32.totalorder %s260, %s261
      %p272 = scmp.eq.s32.totalorder %s38, 0
      %p273 = por %p271, %p272
      %p274 = scmp.ne.s32.totalorder %s260, %s261
      %p275 = scmp.eq.s32.totalorder %s39, 1
      %p276 = por %p274, %p275
      %p278 = scmp.ne.s32.totalorder %s261, %s277
      %p279 = scmp.eq.s32.totalorder %s39, 0
      %p280 = por %p278, %p279
      %s281 = ssub.s32 %s33, %s40
      %p282 = scmp.eq.s32.totalorder %s281, 0
      %s284 = sadd.s32 %s283, 1
      %s285 = scalar_select %p282, %s283, %s284
      %p288 = pneg %p282
      %p289 = scmp.eq.s32.totalorder %s33, 1
      %p290 = por %p288, %p289
      %p291 = scmp.ne.s32.totalorder %s283, %s286
      %p292 = scmp.eq.s32.totalorder %s33, 0
      %p293 = por %p291, %p292
      %p294 = scmp.ne.s32.totalorder %s283, %s286
      %p295 = scmp.eq.s32.totalorder %s38, 1
      %p296 = por %p294, %p295
      %p297 = scmp.ne.s32.totalorder %s286, %s287
      %p298 = scmp.eq.s32.totalorder %s38, 0
      %p299 = por %p297, %p298
      %p300 = scmp.ne.s32.totalorder %s286, %s287
      %p301 = scmp.eq.s32.totalorder %s39, 1
      %p302 = por %p300, %p301
      %p304 = scmp.ne.s32.totalorder %s287, %s303
      %p305 = scmp.eq.s32.totalorder %s39, 0
      %p306 = por %p304, %p305
      %s307 = ssub.s32 %s33, %s40
      %p308 = scmp.eq.s32.totalorder %s307, 0
      %s310 = sadd.s32 %s309, 1
      %s311 = scalar_select %p308, %s309, %s310
      %p314 = pneg %p308
      %p315 = scmp.eq.s32.totalorder %s33, 1
      %p316 = por %p314, %p315
      %p317 = scmp.ne.s32.totalorder %s309, %s312
      %p318 = scmp.eq.s32.totalorder %s33, 0
      %p319 = por %p317, %p318
      %p320 = scmp.ne.s32.totalorder %s309, %s312
      %p321 = scmp.eq.s32.totalorder %s38, 1
      %p322 = por %p320, %p321
      %p323 = scmp.ne.s32.totalorder %s312, %s313
      %p324 = scmp.eq.s32.totalorder %s38, 0
      %p325 = por %p323, %p324
      %p326 = scmp.ne.s32.totalorder %s312, %s313
      %p327 = scmp.eq.s32.totalorder %s39, 1
      %p328 = por %p326, %p327
      %p330 = scmp.ne.s32.totalorder %s313, %s329
      %p331 = scmp.eq.s32.totalorder %s39, 0
      %p332 = por %p330, %p331
      %s333 = ssub.s32 %s33, %s40
      %p334 = scmp.eq.s32.totalorder %s333, 0
      %s336 = sadd.s32 %s335, 1
      %s337 = scalar_select %p334, %s335, %s336
      %p340 = pneg %p334
      %p341 = scmp.eq.s32.totalorder %s33, 1
      %p342 = por %p340, %p341
      %p343 = scmp.ne.s32.totalorder %s335, %s338
      %p344 = scmp.eq.s32.totalorder %s33, 0
      %p345 = por %p343, %p344
      %p346 = scmp.ne.s32.totalorder %s335, %s338
      %p347 = scmp.eq.s32.totalorder %s38, 1
      %p348 = por %p346, %p347
      %p349 = scmp.ne.s32.totalorder %s338, %s339
      %p350 = scmp.eq.s32.totalorder %s38, 0
      %p351 = por %p349, %p350
      %p352 = scmp.ne.s32.totalorder %s338, %s339
      %p353 = scmp.eq.s32.totalorder %s39, 1
      %p354 = por %p352, %p353
      %p356 = scmp.ne.s32.totalorder %s339, %s355
      %p357 = scmp.eq.s32.totalorder %s39, 0
      %p358 = por %p356, %p357
      %s359 = ssub.s32 %s33, %s40
      %p360 = scmp.eq.s32.totalorder %s359, 0
      %s362 = sadd.s32 %s361, 1
      %s363 = scalar_select %p360, %s361, %s362
      %p366 = pneg %p360
      %p367 = scmp.eq.s32.totalorder %s33, 1
      %p368 = por %p366, %p367
      %p369 = scmp.ne.s32.totalorder %s361, %s364
      %p370 = scmp.eq.s32.totalorder %s33, 0
      %p371 = por %p369, %p370
      %p372 = scmp.ne.s32.totalorder %s361, %s364
      %p373 = scmp.eq.s32.totalorder %s38, 1
      %p374 = por %p372, %p373
      %p375 = scmp.ne.s32.totalorder %s364, %s365
      %p376 = scmp.eq.s32.totalorder %s38, 0
      %p377 = por %p375, %p376
      %p378 = scmp.ne.s32.totalorder %s364, %s365
      %p379 = scmp.eq.s32.totalorder %s39, 1
      %p380 = por %p378, %p379
      %p382 = scmp.ne.s32.totalorder %s365, %s381
      %p383 = scmp.eq.s32.totalorder %s39, 0
      %p384 = por %p382, %p383
      %s385 = ssub.s32 %s33, %s40
      %p386 = scmp.eq.s32.totalorder %s385, 0
      %s388 = sadd.s32 %s387, 1
      %s389 = scalar_select %p386, %s387, %s388
      %p392 = pneg %p386
      %p393 = scmp.eq.s32.totalorder %s33, 1
      %p394 = por %p392, %p393
      %p395 = scmp.ne.s32.totalorder %s387, %s390
      %p396 = scmp.eq.s32.totalorder %s33, 0
      %p397 = por %p395, %p396
      %p398 = scmp.ne.s32.totalorder %s387, %s390
      %p399 = scmp.eq.s32.totalorder %s38, 1
      %p400 = por %p398, %p399
      %p401 = scmp.ne.s32.totalorder %s390, %s391
      %p402 = scmp.eq.s32.totalorder %s38, 0
      %p403 = por %p401, %p402
      %p404 = scmp.ne.s32.totalorder %s390, %s391
      %p405 = scmp.eq.s32.totalorder %s39, 1
      %p406 = por %p404, %p405
      %p408 = scmp.ne.s32.totalorder %s391, %s407
      %p409 = scmp.eq.s32.totalorder %s39, 0
      %p410 = por %p408, %p409
      %s411 = ssub.s32 %s33, %s40
      %p412 = scmp.eq.s32.totalorder %s411, 0
      %s414 = sadd.s32 %s413, 1
      %s415 = scalar_select %p412, %s413, %s414
      %p418 = pneg %p412
      %p419 = scmp.eq.s32.totalorder %s33, 1
      %p420 = por %p418, %p419
      %p421 = scmp.ne.s32.totalorder %s413, %s416
      %p422 = scmp.eq.s32.totalorder %s33, 0
      %p423 = por %p421, %p422
      %p424 = scmp.ne.s32.totalorder %s413, %s416
      %p425 = scmp.eq.s32.totalorder %s38, 1
      %p426 = por %p424, %p425
      %p427 = scmp.ne.s32.totalorder %s416, %s417
      %p428 = scmp.eq.s32.totalorder %s38, 0
      %p429 = por %p427, %p428
      %p430 = scmp.ne.s32.totalorder %s416, %s417
      %p431 = scmp.eq.s32.totalorder %s39, 1
      %p432 = por %p430, %p431
      %p434 = scmp.ne.s32.totalorder %s417, %s433
      %p435 = scmp.eq.s32.totalorder %s39, 0
      %p436 = por %p434, %p435
      %s438 = sadd.s32 %s437, 1
      %p441 = scmp.eq.s32.totalorder %s33, 1
      %p442 = scmp.ne.s32.totalorder %s437, %s439
      %p443 = scmp.eq.s32.totalorder %s33, 0
      %p444 = por %p442, %p443
      %p445 = scmp.ne.s32.totalorder %s437, %s439
      %p446 = scmp.eq.s32.totalorder %s38, 1
      %p447 = por %p445, %p446
      %p448 = scmp.ne.s32.totalorder %s439, %s440
      %p449 = scmp.eq.s32.totalorder %s38, 0
      %p450 = por %p448, %p449
      %p451 = scmp.ne.s32.totalorder %s439, %s440
      %p452 = scmp.eq.s32.totalorder %s39, 1
      %p453 = por %p451, %p452
      %p455 = scmp.ne.s32.totalorder %s440, %s454
      %p456 = scmp.eq.s32.totalorder %s39, 0
      %p457 = por %p455, %p456
      %s459 = sadd.s32 %s458, 1
      %p462 = scmp.eq.s32.totalorder %s33, 1
      %p463 = scmp.ne.s32.totalorder %s458, %s460
      %p464 = scmp.eq.s32.totalorder %s33, 0
      %p465 = por %p463, %p464
      %p466 = scmp.ne.s32.totalorder %s458, %s460
      %p467 = scmp.eq.s32.totalorder %s38, 1
      %p468 = por %p466, %p467
      %p469 = scmp.ne.s32.totalorder %s460, %s461
      %p470 = scmp.eq.s32.totalorder %s38, 0
      %p471 = por %p469, %p470
      %p472 = scmp.ne.s32.totalorder %s460, %s461
      %p473 = scmp.eq.s32.totalorder %s39, 1
      %p474 = por %p472, %p473
      %p476 = scmp.ne.s32.totalorder %s461, %s475
      %p477 = scmp.eq.s32.totalorder %s39, 0
      %p478 = por %p476, %p477
      %s480 = sadd.s32 %s479, 1
      %p483 = scmp.eq.s32.totalorder %s33, 1
      %p484 = scmp.ne.s32.totalorder %s479, %s481
      %p485 = scmp.eq.s32.totalorder %s33, 0
      %p486 = por %p484, %p485
      %p487 = scmp.ne.s32.totalorder %s479, %s481
      %p488 = scmp.eq.s32.totalorder %s38, 1
      %p489 = por %p487, %p488
      %p490 = scmp.ne.s32.totalorder %s481, %s482
      %p491 = scmp.eq.s32.totalorder %s38, 0
      %p492 = por %p490, %p491
      %p493 = scmp.ne.s32.totalorder %s481, %s482
      %p494 = scmp.eq.s32.totalorder %s39, 1
      %p495 = por %p493, %p494
      %p497 = scmp.ne.s32.totalorder %s482, %s496
      %p498 = scmp.eq.s32.totalorder %s39, 0
      %p499 = por %p497, %p498
      %s501 = sadd.s32 %s500, 1
      %p504 = scmp.eq.s32.totalorder %s33, 1
      %p505 = scmp.ne.s32.totalorder %s500, %s502
      %p506 = scmp.eq.s32.totalorder %s33, 0
      %p507 = por %p505, %p506
      %p508 = scmp.ne.s32.totalorder %s500, %s502
      %p509 = scmp.eq.s32.totalorder %s38, 1
      %p510 = por %p508, %p509
      %p511 = scmp.ne.s32.totalorder %s502, %s503
      %p512 = scmp.eq.s32.totalorder %s38, 0
      %p513 = por %p511, %p512
      %p514 = scmp.ne.s32.totalorder %s502, %s503
      %p515 = scmp.eq.s32.totalorder %s39, 1
      %p516 = por %p514, %p515
      %p518 = scmp.ne.s32.totalorder %s503, %s517
      %p519 = scmp.eq.s32.totalorder %s39, 0
      %p520 = por %p518, %p519
      %s522 = sadd.s32 %s521, 1
      %p525 = scmp.eq.s32.totalorder %s33, 1
      %p526 = scmp.ne.s32.totalorder %s521, %s523
      %p527 = scmp.eq.s32.totalorder %s33, 0
      %p528 = por %p526, %p527
      %p529 = scmp.ne.s32.totalorder %s521, %s523
      %p530 = scmp.eq.s32.totalorder %s38, 1
      %p531 = por %p529, %p530
      %p532 = scmp.ne.s32.totalorder %s523, %s524
      %p533 = scmp.eq.s32.totalorder %s38, 0
      %p534 = por %p532, %p533
      %p535 = scmp.ne.s32.totalorder %s523, %s524
      %p536 = scmp.eq.s32.totalorder %s39, 1
      %p537 = por %p535, %p536
      %p539 = scmp.ne.s32.totalorder %s524, %s538
      %p540 = scmp.eq.s32.totalorder %s39, 0
      %p541 = por %p539, %p540
      %p542 = scmp.le.s32.totalorder 1, %s33
      %p543 = scmp.lt.s32.totalorder %s33, 3
      %p544 = pnand %p542, %p543
      %p545 = pneg %p544
      // Predicated region
      $region9: #{vit_forward.1} parent=5 // pred_check
        _
      $region10: #{vit_forward.1} parent=5 // pred_check_branch
        %547 = sbr.rel (%p544) target = $region12
      $region11: #{vit_forward.1} parent=5 // pred_region
        %s548 = ssub.s32 %s33, 1
        // Predicated region
        $region13: #{vit_forward.1} parent=11 // pred_check
          %p549 = pneg %p54
        $region14: #{vit_forward.1} parent=11 // pred_check_branch
          %551 = sbr.rel (%p549) target = $region16
        $region15: #{vit_forward.1} parent=11 // pred_region
          _
        $region16: #{vit_forward.1} parent=11 // pred_fallthru
          _
        // Predicated region
        $region17: #{vit_forward.1} parent=11 // pred_check
          %p552 = pneg %p75
        $region18: #{vit_forward.1} parent=11 // pred_check_branch
          %554 = sbr.rel (%p552) target = $region20
        $region19: #{vit_forward.1} parent=11 // pred_region
          _
        $region20: #{vit_forward.1} parent=11 // pred_fallthru
          _
        // Predicated region
        $region21: #{vit_forward.1} parent=11 // pred_check
          %p555 = pneg %p96
        $region22: #{vit_forward.1} parent=11 // pred_check_branch
          %557 = sbr.rel (%p555) target = $region24
        $region23: #{vit_forward.1} parent=11 // pred_region
          _
        $region24: #{vit_forward.1} parent=11 // pred_fallthru
          _
        // Predicated region
        $region25: #{vit_forward.1} parent=11 // pred_check
          %p558 = pneg %p117
        $region26: #{vit_forward.1} parent=11 // pred_check_branch
          %560 = sbr.rel (%p558) target = $region28
        $region27: #{vit_forward.1} parent=11 // pred_region
          _
        $region28: #{vit_forward.1} parent=11 // pred_fallthru
          _
        // Predicated region
        $region29: #{vit_forward.1} parent=11 // pred_check
          %p561 = pneg %p450
        $region30: #{vit_forward.1} parent=11 // pred_check_branch
          %563 = sbr.rel (%p561) target = $region32
        $region31: #{vit_forward.1} parent=11 // pred_region
          _
        $region32: #{vit_forward.1} parent=11 // pred_fallthru
          _
        // Predicated region
        $region33: #{vit_forward.1} parent=11 // pred_check
          %p564 = pneg %p471
        $region34: #{vit_forward.1} parent=11 // pred_check_branch
          %566 = sbr.rel (%p564) target = $region36
        $region35: #{vit_forward.1} parent=11 // pred_region
          _
        $region36: #{vit_forward.1} parent=11 // pred_fallthru
          _
        // Predicated region
        $region37: #{vit_forward.1} parent=11 // pred_check
          %p567 = pneg %p492
        $region38: #{vit_forward.1} parent=11 // pred_check_branch
          %569 = sbr.rel (%p567) target = $region40
        $region39: #{vit_forward.1} parent=11 // pred_region
          %571 = vsyncadd [#allocation7], 0
          %s572 = sshll.u32 %s18, 4
          %s573 = int_to_ptr.hbm [resolvable:$true] %s572
          %s574 = sshll.u32 [#allocation8], 4
          %s575 = int_to_ptr.vmem [resolvable:$true] %s574
          %580 = dma.hbm_to_vmem [thread:$0]  %s573, 1024, %s575, [#allocation7], 64, 64, 4
        $region40: #{vit_forward.1} parent=11 // pred_fallthru
          _
        // Predicated region
        $region41: #{vit_forward.1} parent=11 // pred_check
          %p581 = pneg %p513
        $region42: #{vit_forward.1} parent=11 // pred_check_branch
          %583 = sbr.rel (%p581) target = $region44
        $region43: #{vit_forward.1} parent=11 // pred_region
          _
        $region44: #{vit_forward.1} parent=11 // pred_fallthru
          _
      $region12: #{vit_forward.1} parent=5 // pred_fallthru
        _
      %p584 = scmp.lt.s32.totalorder %s33, 2
      // Predicated region
      $region45: #{vit_forward.1} parent=5 // pred_check
        %p585 = pneg %p584
      $region46: #{vit_forward.1} parent=5 // pred_check_branch
        %587 = sbr.rel (%p585) target = $region48
      $region47: #{vit_forward.1} parent=5 // pred_region
        // Predicated region
        $region49: #{vit_forward.1} parent=47 // pred_check
          %p588 = pneg %p137
        $region50: #{vit_forward.1} parent=47 // pred_check_branch
          %590 = sbr.rel (%p588) target = $region52
        $region51: #{vit_forward.1} parent=47 // pred_region
          %p591 = scmp.lt.s32.totalorder %s33, 1
          %s592 = scalar_select %p591, %s33, 1
          %s593 = scalar_lea.vmem %s4, %s592
        $region52: #{vit_forward.1} parent=47 // pred_fallthru
          _
        // Predicated region
        $region53: #{vit_forward.1} parent=47 // pred_check
          %p594 = pneg %p163
        $region54: #{vit_forward.1} parent=47 // pred_check_branch
          %596 = sbr.rel (%p594) target = $region56
        $region55: #{vit_forward.1} parent=47 // pred_region
          %p597 = scmp.lt.s32.totalorder %s33, 1
          %s598 = scalar_select %p597, %s33, 1
          %s599 = scalar_lea.vmem %s5, %s598
        $region56: #{vit_forward.1} parent=47 // pred_fallthru
          _
        // Predicated region
        $region57: #{vit_forward.1} parent=47 // pred_check
          %p600 = pneg %p189
        $region58: #{vit_forward.1} parent=47 // pred_check_branch
          %602 = sbr.rel (%p600) target = $region60
        $region59: #{vit_forward.1} parent=47 // pred_region
          %p603 = scmp.lt.s32.totalorder %s33, 1
          %s604 = scalar_select %p603, %s33, 1
          %s605 = smul.addr %s604, 48
          %s606 = smul.addr %s605, 4
          %s607 = scalar_lea.vmem %s6, %s606
        $region60: #{vit_forward.1} parent=47 // pred_fallthru
          _
        // Predicated region
        $region61: #{vit_forward.1} parent=47 // pred_check
          %p608 = pneg %p215
        $region62: #{vit_forward.1} parent=47 // pred_check_branch
          %610 = sbr.rel (%p608) target = $region64
        $region63: #{vit_forward.1} parent=47 // pred_region
          %p611 = scmp.lt.s32.totalorder %s33, 1
          %s612 = scalar_select %p611, %s33, 1
          %s613 = smul.addr %s612, 3
          %s614 = scalar_lea.vmem %s7, %s613
        $region64: #{vit_forward.1} parent=47 // pred_fallthru
          _
        // Predicated region
        $region65: #{vit_forward.1} parent=47 // pred_check
          %p615 = pneg %p241
        $region66: #{vit_forward.1} parent=47 // pred_check_branch
          %617 = sbr.rel (%p615) target = $region68
        $region67: #{vit_forward.1} parent=47 // pred_region
          %s618 = sand.u32 %s231, 1
          %s619 = scalar_lea.sflag [#allocation4], %s618
          %s620 = sand.u32 %s231, 1
          %s621 = smul.addr %s620, 64
          %s622 = scalar_lea.vmem [#allocation3], %s621
          %624 = vsyncadd %s619, 0
          %s625 = smul.addr %s33, 16
          %s626 = smul.addr %s625, 4
          %s627 = scalar_lea.hbm %s8, %s626
          %s628 = sshll.u32 %s627, 4
          %s629 = int_to_ptr.hbm [resolvable:$true] %s628
          %s630 = sshll.u32 %s622, 4
          %s631 = int_to_ptr.vmem [resolvable:$true] %s630
          %636 = dma.hbm_to_vmem [thread:$0]  %s629, 1024, %s631, %s619, 64, 64, 4
        $region68: #{vit_forward.1} parent=47 // pred_fallthru
          _
        // Predicated region
        $region69: #{vit_forward.1} parent=47 // pred_check
          %p637 = pneg %p267
        $region70: #{vit_forward.1} parent=47 // pred_check_branch
          %639 = sbr.rel (%p637) target = $region72
        $region71: #{vit_forward.1} parent=47 // pred_region
          %p640 = scmp.lt.s32.totalorder %s33, 1
          %s641 = scalar_select %p640, %s33, 1
          %s642 = scalar_lea.vmem %s9, %s641
        $region72: #{vit_forward.1} parent=47 // pred_fallthru
          _
        // Predicated region
        $region73: #{vit_forward.1} parent=47 // pred_check
          %p643 = pneg %p293
        $region74: #{vit_forward.1} parent=47 // pred_check_branch
          %645 = sbr.rel (%p643) target = $region76
        $region75: #{vit_forward.1} parent=47 // pred_region
          %p646 = scmp.lt.s32.totalorder %s33, 1
          %s647 = scalar_select %p646, %s33, 1
          %s648 = scalar_lea.vmem %s10, %s647
        $region76: #{vit_forward.1} parent=47 // pred_fallthru
          _
        // Predicated region
        $region77: #{vit_forward.1} parent=47 // pred_check
          %p649 = pneg %p319
        $region78: #{vit_forward.1} parent=47 // pred_check_branch
          %651 = sbr.rel (%p649) target = $region80
        $region79: #{vit_forward.1} parent=47 // pred_region
          %p652 = scmp.lt.s32.totalorder %s33, 1
          %s653 = scalar_select %p652, %s33, 1
          %s654 = scalar_lea.vmem %s11, %s653
        $region80: #{vit_forward.1} parent=47 // pred_fallthru
          _
        // Predicated region
        $region81: #{vit_forward.1} parent=47 // pred_check
          %p655 = pneg %p345
        $region82: #{vit_forward.1} parent=47 // pred_check_branch
          %657 = sbr.rel (%p655) target = $region84
        $region83: #{vit_forward.1} parent=47 // pred_region
          %p658 = scmp.lt.s32.totalorder %s33, 1
          %s659 = scalar_select %p658, %s33, 1
          %s660 = smul.addr %s659, 64
          %s661 = smul.addr %s660, 4
          %s662 = scalar_lea.vmem %s12, %s661
        $region84: #{vit_forward.1} parent=47 // pred_fallthru
          _
        // Predicated region
        $region85: #{vit_forward.1} parent=47 // pred_check
          %p663 = pneg %p371
        $region86: #{vit_forward.1} parent=47 // pred_check_branch
          %665 = sbr.rel (%p663) target = $region88
        $region87: #{vit_forward.1} parent=47 // pred_region
          %p666 = scmp.lt.s32.totalorder %s33, 1
          %s667 = scalar_select %p666, %s33, 1
          %s668 = smul.addr %s667, 4
          %s669 = scalar_lea.vmem %s13, %s668
        $region88: #{vit_forward.1} parent=47 // pred_fallthru
          _
        // Predicated region
        $region89: #{vit_forward.1} parent=47 // pred_check
          %p670 = pneg %p397
        $region90: #{vit_forward.1} parent=47 // pred_check_branch
          %672 = sbr.rel (%p670) target = $region92
        $region91: #{vit_forward.1} parent=47 // pred_region
          %s673 = sand.u32 %s33, 1
          %s674 = scalar_lea.sflag [#allocation7], %s673
          %s675 = sand.u32 %s387, 1
          %s676 = smul.addr %s675, 256
          %s677 = scalar_lea.vmem [#allocation6], %s676
          %679 = vsyncadd %s674, 0
          %s680 = smul.addr %s33, 64
          %s681 = smul.addr %s680, 4
          %s682 = scalar_lea.hbm %s14, %s681
          %s683 = sshll.u32 %s682, 4
          %s684 = int_to_ptr.hbm [resolvable:$true] %s683
          %s685 = sshll.u32 %s677, 4
          %s686 = int_to_ptr.vmem [resolvable:$true] %s685
          %691 = dma.hbm_to_vmem [thread:$0]  %s684, 4096, %s686, %s674, 64, 64, 4
        $region92: #{vit_forward.1} parent=47 // pred_fallthru
          _
        // Predicated region
        $region93: #{vit_forward.1} parent=47 // pred_check
          %p692 = pneg %p423
        $region94: #{vit_forward.1} parent=47 // pred_check_branch
          %694 = sbr.rel (%p692) target = $region96
        $region95: #{vit_forward.1} parent=47 // pred_region
          %p695 = scmp.lt.s32.totalorder %s33, 1
          %s696 = scalar_select %p695, %s33, 1
          %s697 = scalar_lea.vmem %s15, %s696
        $region96: #{vit_forward.1} parent=47 // pred_fallthru
          _
      $region48: #{vit_forward.1} parent=5 // pred_fallthru
        _
      %p698 = scmp.le.s32.totalorder 1, %s33
      %p699 = scmp.lt.s32.totalorder %s33, 3
      %p700 = pnand %p698, %p699
      %p701 = pneg %p700
      // Predicated region
      $region97: #{vit_forward.1} parent=5 // pred_check
        _
      $region98: #{vit_forward.1} parent=5 // pred_check_branch
        %703 = sbr.rel (%p700) target = $region100
      $region99: #{vit_forward.1} parent=5 // pred_region
        %s704 = ssub.s32 %s33, 1
        %s705 = sand.u32 %s234, 1
        %s706 = scalar_lea.sflag [#allocation4], %s705
        %s707 = sand.u32 %s234, 1
        %s708 = smul.addr %s707, 64
        %s709 = scalar_lea.vmem [#allocation3], %s708
        // Predicated region
        $region101: #{vit_forward.1} parent=99 // pred_check
          %p710 = pneg %p247
        $region102: #{vit_forward.1} parent=99 // pred_check_branch
          %712 = sbr.rel (%p710) target = $region104
        $region103: #{vit_forward.1} parent=99 // pred_region
          %714 = dma.done %s706, 1024
        $region104: #{vit_forward.1} parent=99 // pred_fallthru
          _
        %s715 = sand.u32 %s38, 1
        %s716 = scalar_lea.sflag [#allocation7], %s715
        %s717 = sand.u32 %s390, 1
        %s718 = smul.addr %s717, 256
        %s719 = scalar_lea.vmem [#allocation6], %s718
        // Predicated region
        $region105: #{vit_forward.1} parent=99 // pred_check
          %p720 = pneg %p403
        $region106: #{vit_forward.1} parent=99 // pred_check_branch
          %722 = sbr.rel (%p720) target = $region108
        $region107: #{vit_forward.1} parent=99 // pred_region
          %724 = dma.done %s716, 4096
        $region108: #{vit_forward.1} parent=99 // pred_fallthru
          _
        // Predicated region
        $region109: #{vit_forward.1} parent=99 // pred_check
          %p725 = pneg %p492
        $region110: #{vit_forward.1} parent=99 // pred_check_branch
          %727 = sbr.rel (%p725) target = $region112
        $region111: #{vit_forward.1} parent=99 // pred_region
          %729 = dma.done [#allocation7], 1024
        $region112: #{vit_forward.1} parent=99 // pred_fallthru
          _
        %p730 = pneg %p54
        %p731 = pneg %p51
        %p732 = pneg %p75
        %p733 = pneg %p72
        %p734 = pneg %p96
        %p735 = pneg %p93
        %p736 = pneg %p117
        %p737 = pneg %p114
        %p738 = scmp.lt.s32.totalorder %s38, 1
        %s739 = scalar_select %p738, %s38, 1
        %s740 = scalar_lea.vmem %s4, %s739
        %p741 = pneg %p143
        %p742 = pneg %p140
        %p743 = scmp.lt.s32.totalorder %s38, 1
        %s744 = scalar_select %p743, %s38, 1
        %s745 = scalar_lea.vmem %s5, %s744
        %p746 = pneg %p169
        %p747 = pneg %p166
        %p748 = scmp.lt.s32.totalorder %s38, 1
        %s749 = scalar_select %p748, %s38, 1
        %s750 = smul.addr %s749, 48
        %s751 = smul.addr %s750, 4
        %s752 = scalar_lea.vmem %s6, %s751
        %p753 = pneg %p195
        %p754 = pneg %p192
        %p755 = scmp.lt.s32.totalorder %s38, 1
        %s756 = scalar_select %p755, %s38, 1
        %s757 = smul.addr %s756, 3
        %s758 = scalar_lea.vmem %s7, %s757
        %p759 = pneg %p221
        %p760 = pneg %p218
        %s761 = sand.u32 %s234, 1
        %s762 = scalar_lea.sflag [#allocation4], %s761
        %s763 = sand.u32 %s234, 1
        %s764 = smul.addr %s763, 64
        %s765 = scalar_lea.vmem [#allocation3], %s764
        %p766 = pneg %p247
        %p767 = pneg %p244
        %p768 = scmp.lt.s32.totalorder %s38, 1
        %s769 = scalar_select %p768, %s38, 1
        %s770 = scalar_lea.vmem %s9, %s769
        %p771 = pneg %p273
        %p772 = pneg %p270
        %p773 = scmp.lt.s32.totalorder %s38, 1
        %s774 = scalar_select %p773, %s38, 1
        %s775 = scalar_lea.vmem %s10, %s774
        %p776 = pneg %p299
        %p777 = pneg %p296
        %p778 = scmp.lt.s32.totalorder %s38, 1
        %s779 = scalar_select %p778, %s38, 1
        %s780 = scalar_lea.vmem %s11, %s779
        %p781 = pneg %p325
        %p782 = pneg %p322
        %p783 = scmp.lt.s32.totalorder %s38, 1
        %s784 = scalar_select %p783, %s38, 1
        %s785 = smul.addr %s784, 64
        %s786 = smul.addr %s785, 4
        %s787 = scalar_lea.vmem %s12, %s786
        %p788 = pneg %p351
        %p789 = pneg %p348
        %p790 = scmp.lt.s32.totalorder %s38, 1
        %s791 = scalar_select %p790, %s38, 1
        %s792 = smul.addr %s791, 4
        %s793 = scalar_lea.vmem %s13, %s792
        %p794 = pneg %p377
        %p795 = pneg %p374
        %s796 = sand.u32 %s38, 1
        %s797 = scalar_lea.sflag [#allocation7], %s796
        %s798 = sand.u32 %s390, 1
        %s799 = smul.addr %s798, 256
        %s800 = scalar_lea.vmem [#allocation6], %s799
        %p801 = pneg %p403
        %p802 = pneg %p400
        %p803 = scmp.lt.s32.totalorder %s38, 1
        %s804 = scalar_select %p803, %s38, 1
        %s805 = scalar_lea.vmem %s15, %s804
        %p806 = pneg %p429
        %p807 = pneg %p426
        %p808 = pneg %p450
        %p809 = pneg %p447
        %p810 = pneg %p471
        %p811 = pneg %p468
        %p812 = pneg %p492
        %p813 = pneg %p489
        %p814 = pneg %p513
        %p815 = pneg %p510
        %p816 = pneg %p534
        %p817 = pneg %p531
        %p818 = scmp.lt.s32.totalorder %s38, 1
        %s819 = scalar_select %p818, %s38, 1
        %s820 = scalar_lea.vmem %s4, %s819
        %p821 = scmp.lt.s32.totalorder %s38, 1
        %s822 = scalar_select %p821, %s38, 1
        %s823 = scalar_lea.vmem %s5, %s822
        %p824 = scmp.lt.s32.totalorder %s38, 1
        %s825 = scalar_select %p824, %s38, 1
        %s826 = smul.addr %s825, 48
        %s827 = smul.addr %s826, 4
        %s828 = scalar_lea.vmem %s6, %s827
        %p829 = scmp.lt.s32.totalorder %s38, 1
        %s830 = scalar_select %p829, %s38, 1
        %s831 = smul.addr %s830, 3
        %s832 = scalar_lea.vmem %s7, %s831
        %p833 = scmp.lt.s32.totalorder %s38, 1
        %s834 = scalar_select %p833, %s38, 1
        %s835 = scalar_lea.vmem %s9, %s834
        %p836 = scmp.lt.s32.totalorder %s38, 1
        %s837 = scalar_select %p836, %s38, 1
        %s838 = scalar_lea.vmem %s10, %s837
        %p839 = scmp.lt.s32.totalorder %s38, 1
        %s840 = scalar_select %p839, %s38, 1
        %s841 = scalar_lea.vmem %s11, %s840
        %p842 = scmp.lt.s32.totalorder %s38, 1
        %s843 = scalar_select %p842, %s38, 1
        %s844 = smul.addr %s843, 64
        %s845 = smul.addr %s844, 4
        %s846 = scalar_lea.vmem %s12, %s845
        %p847 = scmp.lt.s32.totalorder %s38, 1
        %s848 = scalar_select %p847, %s38, 1
        %s849 = smul.addr %s848, 4
        %s850 = scalar_lea.vmem %s13, %s849
        %p851 = scmp.lt.s32.totalorder %s38, 1
        %s852 = scalar_select %p851, %s38, 1
        %s853 = scalar_lea.vmem %s15, %s852
        %p855 = scmp.eq.s32.totalorder %s38, 0
        // Predicated region
        $region113: #{vit_forward.1} parent=99 // pred_check
          %p856 = pneg %p855
        $region114: #{vit_forward.1} parent=99 // pred_check_branch
          %858 = sbr.rel (%p856) target = $region116
        $region115: #{vit_forward.1} parent=99 // pred_region
          %v859 = vld [vmem:[%s0] sm:$0xff]
          %v860 = vld [vmem:[%s0 + $0x8] sm:$0xff]
          %v861 = vld [vmem:[%s0 + $0x10] sm:$0xff]
          %v862 = vld [vmem:[%s0 + $0x18] sm:$0xff]
          %v863 = vpack.c.bf16 %v861, %v859
          %v864 = vpack.c.bf16 %v862, %v860
          %v865 = vld [vmem:[%s3] sm:$0xf]
          %v866 = vld [vmem:[%s3 + $0x4] sm:$0xf]
          %v867 = vld [vmem:[%s3 + $0x8] sm:$0xf]
          %v868 = vld [vmem:[%s3 + $0xc] sm:$0xf]
          %v869 = vld [vmem:[%s3 + $0x10] sm:$0xf]
          %v870 = vld [vmem:[%s3 + $0x14] sm:$0xf]
          %v871 = vld [vmem:[%s3 + $0x18] sm:$0xf]
          %v872 = vld [vmem:[%s3 + $0x1c] sm:$0xf]
          %v873 = vld [vmem:[%s3 + $0x20] sm:$0xf]
          %v874 = vld [vmem:[%s3 + $0x24] sm:$0xf]
          %v875 = vld [vmem:[%s3 + $0x28] sm:$0xf]
          %v876 = vld [vmem:[%s3 + $0x2c] sm:$0xf]
          %v877 = vld [vmem:[%s3 + $0x30] sm:$0xf]
          %v878 = vld [vmem:[%s3 + $0x34] sm:$0xf]
          %v879 = vld [vmem:[%s3 + $0x38] sm:$0xf]
          %v880 = vld [vmem:[%s3 + $0x3c] sm:$0xf]
          %v881 = vld [vmem:[%s3 + $0x40] sm:$0xf]
          %v882 = vld [vmem:[%s3 + $0x44] sm:$0xf]
          %v883 = vld [vmem:[%s3 + $0x48] sm:$0xf]
          %v884 = vld [vmem:[%s3 + $0x4c] sm:$0xf]
          %v885 = vld [vmem:[%s3 + $0x50] sm:$0xf]
          %v886 = vld [vmem:[%s3 + $0x54] sm:$0xf]
          %v887 = vld [vmem:[%s3 + $0x58] sm:$0xf]
          %v888 = vld [vmem:[%s3 + $0x5c] sm:$0xf]
          %v889 = vld [vmem:[%s1] sm:$0xff]
          %v890 = vld [vmem:[%s1 + $0x8] sm:$0xff]
          %v915 = vunpack.c.l.b16 %v865
          %v916 = vunpack.c.l.b16 %v866
          %v917 = vunpack.c.l.b16 %v867
          %v918 = vunpack.c.l.b16 %v868
          %v919 = vunpack.c.l.b16 %v869
          %v920 = vunpack.c.l.b16 %v870
          %v921 = vunpack.c.l.b16 %v871
          %v922 = vunpack.c.l.b16 %v872
          %v923 = vunpack.c.l.b16 %v873
          %v924 = vunpack.c.l.b16 %v874
          %v925 = vunpack.c.l.b16 %v875
          %v926 = vunpack.c.l.b16 %v876
          %v927 = vunpack.c.l.b16 %v877
          %v928 = vunpack.c.l.b16 %v878
          %v929 = vunpack.c.l.b16 %v879
          %v930 = vunpack.c.l.b16 %v880
          %v931 = vunpack.c.l.b16 %v881
          %v932 = vunpack.c.l.b16 %v882
          %v933 = vunpack.c.l.b16 %v883
          %v934 = vunpack.c.l.b16 %v884
          %v935 = vunpack.c.l.b16 %v885
          %v936 = vunpack.c.l.b16 %v886
          %v937 = vunpack.c.l.b16 %v887
          %v938 = vunpack.c.l.b16 %v888
          %v939 = vpack.c.b16 %v916, %v915
          %v940 = vpack.c.b16 %v918, %v917
          %v941 = vpack.c.b16 %v920, %v919
          %v942 = vpack.c.b16 %v922, %v921
          %v943 = vpack.c.b16 %v924, %v923
          %v944 = vpack.c.b16 %v926, %v925
          %v945 = vpack.c.b16 %v928, %v927
          %v946 = vpack.c.b16 %v930, %v929
          %v947 = vpack.c.b16 %v932, %v931
          %v948 = vpack.c.b16 %v934, %v933
          %v949 = vpack.c.b16 %v936, %v935
          %v950 = vpack.c.b16 %v938, %v937
          %vm963 = vcmask 523264
          %v965 = vsel %vm963, %v864, 0
          %967 = vmatpush.bf16.msra.mxu0 %v946
          %968 = vmatpush.bf16.msra.mxu0 %v945
          %969 = vmatpush.bf16.msra.mxu0 %v944
          %970 = vmatpush.bf16.msra.mxu0 %v943
          %971 = vmatpush.bf16.msra.mxu0 %v942
          %972 = vmatpush.bf16.msra.mxu0 %v941
          %973 = vmatpush.bf16.msra.mxu0 %v940
          %974 = vmatpush.bf16.msra.mxu0 %v939
          %975 = vmatmul.bf16.gmra.mxu0 %v863
          %v976 = vpop.f32.mrf.mxu0
          %v977 = vadd.f32 %v889, %v976
          %v978 = vpop.f32.mrf.mxu0
          %v979 = vadd.f32 %v890, %v978
          %980 = vdwg.mxu0
          %981 = vmatpush.bf16.msra.mxu0 0
          %982 = vmatpush.bf16.msra.mxu0 0
          %983 = vmatpush.bf16.msra.mxu0 0
          %984 = vmatpush.bf16.msra.mxu0 0
          %985 = vmatpush.bf16.msra.mxu0 %v950
          %986 = vmatpush.bf16.msra.mxu0 %v949
          %987 = vmatpush.bf16.msra.mxu0 %v948
          %988 = vmatpush.bf16.msra.mxu0 %v947
          %989 = vmatmul.bf16.gmra.mxu0 %v965
          %v990 = vpop.f32.mrf.mxu0
          %v991 = vadd.f32 %v977, %v990
          %v992 = vpop.f32.mrf.mxu0
          %v993 = vadd.f32 %v979, %v992
          %994 = vdwg.mxu0
          %995 = vst [vmem:[#allocation2] sm:$0xff] %v991
          %996 = vst [vmem:[#allocation2 + $0x8] sm:$0xff] %v993
        $region116: #{vit_forward.1} parent=99 // pred_fallthru
          _
        %v997 = vld [vmem:[#allocation2] sm:$0xff]
        %v998 = vld [vmem:[#allocation2 + $0x8] sm:$0xff]
        %v999 = vld [vmem:[%s2] sm:$0xff]
        %v1000 = vld [vmem:[%s2 + $0x8] sm:$0xff]
        %v1001 = vld [vmem:[%s820] sm:$0x1]
        %v1002 = vld [vmem:[%s823] sm:$0x1]
        %1003 = vadd.xlane.f32.xlu0 %v997
        %v1004 = vpop.xlane.xlu0 %1003
        %1005 = vadd.xlane.f32.xlu0 %v998
        %v1006 = vpop.xlane.xlu0 %1005
        %v1007 = vrcp.pop 128.0
        %v1008 = vmul.f32 128.0, %v1007
        %v1009 = vsub.f32 1.0, %v1008
        %v1010 = vmul.f32 %v1007, %v1009
        %v1011 = vadd.f32 %v1007, %v1010
        %vm1012 = vweird.f32 %v1007
        %v1013 = vsel %vm1012, %v1007, %v1011
        %v1014 = vmul.f32 %v1004, %v1013
        %v1015 = vmul.f32 %v1006, %v1013
        %v1016 = vsub.f32 %v997, %v1014
        %v1017 = vsub.f32 %v998, %v1015
        %v1018 = vmul.f32 %v1016, %v1016
        %v1019 = vmul.f32 %v1017, %v1017
        %1020 = vadd.xlane.f32.xlu0 %v1018
        %v1021 = vpop.xlane.xlu0 %1020
        %1022 = vadd.xlane.f32.xlu0 %v1019
        %v1023 = vpop.xlane.xlu0 %1022
        %v1024 = vmul.f32 %v1021, %v1013
        %v1025 = vmul.f32 %v1023, %v1013
        %v1026 = vadd.f32 %v1024, 1e-06
        %v1027 = vadd.f32 %v1025, 1e-06
        %v1028 = vrsqrt.pop %v1026
        %v1029 = vmul.f32 %v1028, %v1026
        %v1030 = vmul.f32 %v1029, %v1028
        %v1031 = vmul.f32 0.5, %v1030
        %v1032 = vsub.f32 1.5, %v1031
        %v1033 = vmul.f32 %v1028, %v1032
        %vm1034 = vweird.f32 %v1026
        %vm1035 = vweird.f32 %v1028
        %vm1036 = vmor %vm1034, %vm1035
        %v1037 = vsel %vm1036, %v1028, %v1033
        %v1038 = vrsqrt.pop %v1027
        %v1039 = vmul.f32 %v1038, %v1027
        %v1040 = vmul.f32 %v1039, %v1038
        %v1041 = vmul.f32 0.5, %v1040
        %v1042 = vsub.f32 1.5, %v1041
        %v1043 = vmul.f32 %v1038, %v1042
        %vm1044 = vweird.f32 %v1027
        %vm1045 = vweird.f32 %v1038
        %vm1046 = vmor %vm1044, %vm1045
        %v1047 = vsel %vm1046, %v1038, %v1043
        %v1048 = vmul.f32 %v1016, %v1037
        %v1049 = vmul.f32 %v1017, %v1047
        %v1051 = vperm.slane %v1001, 0
        %v1053 = vmul.f32 %v1048, %v1051
        %v1054 = vmul.f32 %v1049, %v1051
        %v1056 = vperm.slane %v1002, 0
        %v1058 = vadd.f32 %v1053, %v1056
        %v1059 = vadd.f32 %v1054, %v1056
        %v1060 = vpack.c.bf16 %v1059, %v1058
        %v1061 = vld [vmem:[%s828] sm:$0xff]
        %v1062 = vld [vmem:[%s828 + $0x8] sm:$0xf]
        %v1063 = vld [vmem:[%s828 + $0xc] sm:$0xff]
        %v1064 = vld [vmem:[%s828 + $0x14] sm:$0xf]
        %v1065 = vld [vmem:[%s828 + $0x18] sm:$0xff]
        %v1066 = vld [vmem:[%s828 + $0x20] sm:$0xf]
        %v1067 = vld [vmem:[%s828 + $0x24] sm:$0xff]
        %v1068 = vld [vmem:[%s828 + $0x2c] sm:$0xf]
        %v1069 = vld [vmem:[%s828 + $0x30] sm:$0xff]
        %v1070 = vld [vmem:[%s828 + $0x38] sm:$0xf]
        %v1071 = vld [vmem:[%s828 + $0x3c] sm:$0xff]
        %v1072 = vld [vmem:[%s828 + $0x44] sm:$0xf]
        %v1073 = vld [vmem:[%s828 + $0x48] sm:$0xff]
        %v1074 = vld [vmem:[%s828 + $0x50] sm:$0xf]
        %v1075 = vld [vmem:[%s828 + $0x54] sm:$0xff]
        %v1076 = vld [vmem:[%s828 + $0x5c] sm:$0xf]
        %v1077 = vld [vmem:[%s828 + $0x60] sm:$0xff]
        %v1078 = vld [vmem:[%s828 + $0x68] sm:$0xf]
        %v1079 = vld [vmem:[%s828 + $0x6c] sm:$0xff]
        %v1080 = vld [vmem:[%s828 + $0x74] sm:$0xf]
        %v1081 = vld [vmem:[%s828 + $0x78] sm:$0xff]
        %v1082 = vld [vmem:[%s828 + $0x80] sm:$0xf]
        %v1083 = vld [vmem:[%s828 + $0x84] sm:$0xff]
        %v1084 = vld [vmem:[%s828 + $0x8c] sm:$0xf]
        %v1085 = vld [vmem:[%s828 + $0x90] sm:$0xff]
        %v1086 = vld [vmem:[%s828 + $0x98] sm:$0xf]
        %v1087 = vld [vmem:[%s828 + $0x9c] sm:$0xff]
        %v1088 = vld [vmem:[%s828 + $0xa4] sm:$0xf]
        %v1089 = vld [vmem:[%s828 + $0xa8] sm:$0xff]
        %v1090 = vld [vmem:[%s828 + $0xb0] sm:$0xf]
        %v1091 = vld [vmem:[%s828 + $0xb4] sm:$0xff]
        %v1092 = vld [vmem:[%s828 + $0xbc] sm:$0xf]
        %v1093 = vld [vmem:[%s832] sm:$0x7]
        %v1095 = vperm.slane %v1093, 0
        %v1096 = vperm.slane %v1093, 1
        %v1097 = vperm.slane %v1093, 2
        %v1133 = vunpack.c.l.b16 %v1061
        %v1134 = vunpack.c.h.b16 %v1061
        %v1135 = vunpack.c.l.b16 %v1062
        %v1136 = vunpack.c.l.b16 %v1063
        %v1137 = vunpack.c.h.b16 %v1063
        %v1138 = vunpack.c.l.b16 %v1064
        %v1139 = vunpack.c.l.b16 %v1065
        %v1140 = vunpack.c.h.b16 %v1065
        %v1141 = vunpack.c.l.b16 %v1066
        %v1142 = vunpack.c.l.b16 %v1067
        %v1143 = vunpack.c.h.b16 %v1067
        %v1144 = vunpack.c.l.b16 %v1068
        %v1145 = vunpack.c.l.b16 %v1069
        %v1146 = vunpack.c.h.b16 %v1069
        %v1147 = vunpack.c.l.b16 %v1070
        %v1148 = vunpack.c.l.b16 %v1071
        %v1149 = vunpack.c.h.b16 %v1071
        %v1150 = vunpack.c.l.b16 %v1072
        %v1151 = vunpack.c.l.b16 %v1073
        %v1152 = vunpack.c.h.b16 %v1073
        %v1153 = vunpack.c.l.b16 %v1074
        %v1154 = vunpack.c.l.b16 %v1075
        %v1155 = vunpack.c.h.b16 %v1075
        %v1156 = vunpack.c.l.b16 %v1076
        %v1157 = vunpack.c.l.b16 %v1077
        %v1158 = vunpack.c.h.b16 %v1077
        %v1159 = vunpack.c.l.b16 %v1078
        %v1160 = vunpack.c.l.b16 %v1079
        %v1161 = vunpack.c.h.b16 %v1079
        %v1162 = vunpack.c.l.b16 %v1080
        %v1163 = vunpack.c.l.b16 %v1081
        %v1164 = vunpack.c.h.b16 %v1081
        %v1165 = vunpack.c.l.b16 %v1082
        %v1166 = vunpack.c.l.b16 %v1083
        %v1167 = vunpack.c.h.b16 %v1083
        %v1168 = vunpack.c.l.b16 %v1084
        %v1169 = vunpack.c.l.b16 %v1085
        %v1170 = vunpack.c.h.b16 %v1085
        %v1171 = vunpack.c.l.b16 %v1086
        %v1172 = vunpack.c.l.b16 %v1087
        %v1173 = vunpack.c.h.b16 %v1087
        %v1174 = vunpack.c.l.b16 %v1088
        %v1175 = vunpack.c.l.b16 %v1089
        %v1176 = vunpack.c.h.b16 %v1089
        %v1177 = vunpack.c.l.b16 %v1090
        %v1178 = vunpack.c.l.b16 %v1091
        %v1179 = vunpack.c.h.b16 %v1091
        %v1180 = vunpack.c.l.b16 %v1092
        %v1181 = vpack.c.b16 %v1136, %v1133
        %v1182 = vpack.c.b16 %v1137, %v1134
        %v1183 = vpack.c.b16 %v1138, %v1135
        %v1184 = vpack.c.b16 %v1142, %v1139
        %v1185 = vpack.c.b16 %v1143, %v1140
        %v1186 = vpack.c.b16 %v1144, %v1141
        %v1187 = vpack.c.b16 %v1148, %v1145
        %v1188 = vpack.c.b16 %v1149, %v1146
        %v1189 = vpack.c.b16 %v1150, %v1147
        %v1190 = vpack.c.b16 %v1154, %v1151
        %v1191 = vpack.c.b16 %v1155, %v1152
        %v1192 = vpack.c.b16 %v1156, %v1153
        %v1193 = vpack.c.b16 %v1160, %v1157
        %v1194 = vpack.c.b16 %v1161, %v1158
        %v1195 = vpack.c.b16 %v1162, %v1159
        %v1196 = vpack.c.b16 %v1166, %v1163
        %v1197 = vpack.c.b16 %v1167, %v1164
        %v1198 = vpack.c.b16 %v1168, %v1165
        %v1199 = vpack.c.b16 %v1172, %v1169
        %v1200 = vpack.c.b16 %v1173, %v1170
        %v1201 = vpack.c.b16 %v1174, %v1171
        %v1202 = vpack.c.b16 %v1178, %v1175
        %v1203 = vpack.c.b16 %v1179, %v1176
        %v1204 = vpack.c.b16 %v1180, %v1177
        %1229 = vmatpush.bf16.msra.mxu0 %v1202
        %1230 = vmatpush.bf16.msra.mxu0 %v1199
        %1231 = vmatpush.bf16.msra.mxu0 %v1196
        %1232 = vmatpush.bf16.msra.mxu0 %v1193
        %1233 = vmatpush.bf16.msra.mxu0 %v1190
        %1234 = vmatpush.bf16.msra.mxu0 %v1187
        %1235 = vmatpush.bf16.msra.mxu0 %v1184
        %1236 = vmatpush.bf16.msra.mxu0 %v1181
        %1237 = vmatmul.bf16.gmra.mxu0 %v1060
        %v1238 = vpop.f32.mrf.mxu0
        %v1239 = vadd.f32 %v1095, %v1238
        %v1240 = vpop.f32.mrf.mxu0
        %v1241 = vadd.f32 %v1095, %v1240
        %1242 = vdwg.mxu0
        %1243 = vmatpush.bf16.msra.mxu0 %v1203
        %1244 = vmatpush.bf16.msra.mxu0 %v1200
        %1245 = vmatpush.bf16.msra.mxu0 %v1197
        %1246 = vmatpush.bf16.msra.mxu0 %v1194
        %1247 = vmatpush.bf16.msra.mxu0 %v1191
        %1248 = vmatpush.bf16.msra.mxu0 %v1188
        %1249 = vmatpush.bf16.msra.mxu0 %v1185
        %1250 = vmatpush.bf16.msra.mxu0 %v1182
        %1251 = vmatmul.bf16.gmra.mxu0 %v1060
        %v1252 = vpop.f32.mrf.mxu0
        %v1253 = vadd.f32 %v1096, %v1252
        %v1254 = vpop.f32.mrf.mxu0
        %v1255 = vadd.f32 %v1096, %v1254
        %1256 = vdwg.mxu0
        %1257 = vmatpush.bf16.msra.mxu0 %v1204
        %1258 = vmatpush.bf16.msra.mxu0 %v1201
        %1259 = vmatpush.bf16.msra.mxu0 %v1198
        %1260 = vmatpush.bf16.msra.mxu0 %v1195
        %1261 = vmatpush.bf16.msra.mxu0 %v1192
        %1262 = vmatpush.bf16.msra.mxu0 %v1189
        %1263 = vmatpush.bf16.msra.mxu0 %v1186
        %1264 = vmatpush.bf16.msra.mxu0 %v1183
        %1265 = vmatmul.bf16.gmra.mxu0 %v1060
        %v1266 = vpop.f32.mrf.mxu0
        %v1267 = vadd.f32 %v1097, %v1266
        %v1268 = vpop.f32.mrf.mxu0
        %v1269 = vadd.f32 %v1097, %v1268
        %1270 = vdwg.mxu0
        %v1271 = vpack.c.bf16 %v1253, %v1239
        %v1272 = vpack.c.bf16 %v1267, %v1267
        %v1273 = vpack.c.bf16 %v1255, %v1241
        %v1274 = vpack.c.bf16 %v1269, %v1269
        %v1277 = vunpack.c.l.b16 %v1271
        %v1278 = vunpack.c.l.b16 %v1273
        %v1279 = vpack.c.b16 %v1278, %v1277
        %v1280 = vunpack.c.h.b16 %v1271
        %v1281 = vunpack.c.h.b16 %v1273
        %v1282 = vpack.c.b16 %v1281, %v1280
        %vm1283 = vcmask 261120
        %v1285 = vsel %vm1283, %v1279, 0
        %v1288 = vsel %vm1283, %v1282, 0
        %1290 = vmatpush.bf16.xpose.msra.mxu0 0
        %1291 = vmatpush.bf16.xpose.msra.mxu0 0
        %1292 = vmatpush.bf16.xpose.msra.mxu0 0
        %1293 = vmatpush.bf16.xpose.msra.mxu0 0
        %1294 = vmatpush.bf16.xpose.msra.mxu0 0
        %1295 = vmatpush.bf16.xpose.msra.mxu0 0
        %1296 = vmatpush.bf16.xpose.msra.mxu0 0
        %1297 = vmatpush.bf16.xpose.msra.mxu0 %v1288
        %1298 = vmatmul.bf16.gmra.mxu0 %v1285
        %v1299 = vpop.f32.mrf.mxu0
        %v1300 = vadd.f32 0.0, %v1299
        %v1301 = vpop.f32.mrf.mxu0
        %v1302 = vadd.f32 0.0, %v1301
        %1303 = vdwg.mxu0
        %v1304 = vmul.f32 %v1300, 0.17677669
        %v1305 = vmul.f32 %v1302, 0.17677669
        %v1306 = vadd.f32 %v1304, %v999
        %v1307 = vadd.f32 %v1305, %v1000
        %vm1308 = vcmask 130048
        %v1309 = vsel %vm1308, %v1306, -inf
        %1310 = vmax.xlane.f32.xlu0 %v1309
        %v1311 = vpop.xlane.xlu0 %1310
        %v1312 = vsel %vm1308, %v1307, -inf
        %1313 = vmax.xlane.f32.xlu0 %v1312
        %v1314 = vpop.xlane.xlu0 %1313
        %v1315 = vsub.f32 %v1306, %v1311
        %v1316 = vsub.f32 %v1307, %v1314
        %v1317 = vmul.f32 %v1315, 1.442695
        %v1318 = vpow.pop %v1317
        %v1319 = vmul.f32 %v1316, 1.442695
        %v1320 = vpow.pop %v1319
        %v1321 = vsel %vm1308, %v1318, 0.0
        %1322 = vadd.xlane.f32.xlu0 %v1321
        %v1323 = vpop.xlane.xlu0 %1322
        %v1324 = vsel %vm1308, %v1320, 0.0
        %1325 = vadd.xlane.f32.xlu0 %v1324
        %v1326 = vpop.xlane.xlu0 %1325
        %v1327 = vrcp.pop %v1323
        %v1328 = vmul.f32 %v1323, %v1327
        %v1329 = vsub.f32 1.0, %v1328
        %v1330 = vmul.f32 %v1327, %v1329
        %v1331 = vadd.f32 %v1327, %v1330
        %vm1332 = vweird.f32 %v1323
        %vm1333 = vweird.f32 %v1327
        %vm1334 = vmor %vm1332, %vm1333
        %v1335 = vsel %vm1334, %v1327, %v1331
        %v1336 = vand.u32 2147483647, %v1323
        %vm1337 = vcmp.eq.f32.partialorder %v1336, 8.507059e+37
        %v1338 = vand.u32 %v1323, 2147483648
        %v1339 = vor.u32 1.1754944e-38, %v1338
        %v1340 = vsel %vm1337, %v1339, %v1335
        %v1341 = vmul.f32 %v1318, %v1340
        %v1342 = vrcp.pop %v1326
        %v1343 = vmul.f32 %v1326, %v1342
        %v1344 = vsub.f32 1.0, %v1343
        %v1345 = vmul.f32 %v1342, %v1344
        %v1346 = vadd.f32 %v1342, %v1345
        %vm1347 = vweird.f32 %v1326
        %vm1348 = vweird.f32 %v1342
        %vm1349 = vmor %vm1347, %vm1348
        %v1350 = vsel %vm1349, %v1342, %v1346
        %v1351 = vand.u32 2147483647, %v1326
        %vm1352 = vcmp.eq.f32.partialorder %v1351, 8.507059e+37
        %v1353 = vand.u32 %v1326, 2147483648
        %v1354 = vor.u32 1.1754944e-38, %v1353
        %v1355 = vsel %vm1352, %v1354, %v1350
        %v1356 = vmul.f32 %v1320, %v1355
        %v1357 = vpack.c.bf16 %v1356, %v1341
        %v1360 = vunpack.c.l.b16 %v1272
        %v1361 = vunpack.c.l.b16 %v1274
        %v1362 = vpack.c.b16 %v1361, %v1360
        %v1365 = vsel %vm1308, %v1357, 0
        %1367 = vmatpush.bf16.msra.mxu0 0
        %1368 = vmatpush.bf16.msra.mxu0 0
        %1369 = vmatpush.bf16.msra.mxu0 0
        %1370 = vmatpush.bf16.msra.mxu0 0
        %1371 = vmatpush.bf16.msra.mxu0 0
        %1372 = vmatpush.bf16.msra.mxu0 0
        %1373 = vmatpush.bf16.msra.mxu0 0
        %1374 = vmatpush.bf16.msra.mxu0 %v1362
        %1375 = vmatmul.bf16.gmra.mxu0 %v1365
        %v1376 = vpop.f32.mrf.mxu0
        %v1377 = vadd.f32 0.0, %v1376
        %v1378 = vpop.f32.mrf.mxu0
        %v1379 = vadd.f32 0.0, %v1378
        %1380 = vdwg.mxu0
        %1381 = vrot.lane.b32.xlu0 %v1279, 96
        %v1382 = vpop.permute.xlu0 %1381
        %1383 = vrot.lane.b32.xlu0 %v1282, 96
        %v1384 = vpop.permute.xlu0 %1383
        %v1386 = vsel %vm1283, %v1382, 0
        %v1389 = vsel %vm1283, %v1384, 0
        %1391 = vmatpush.bf16.xpose.msra.mxu0 0
        %1392 = vmatpush.bf16.xpose.msra.mxu0 0
        %1393 = vmatpush.bf16.xpose.msra.mxu0 0
        %1394 = vmatpush.bf16.xpose.msra.mxu0 0
        %1395 = vmatpush.bf16.xpose.msra.mxu0 0
        %1396 = vmatpush.bf16.xpose.msra.mxu0 0
        %1397 = vmatpush.bf16.xpose.msra.mxu0 0
        %1398 = vmatpush.bf16.xpose.msra.mxu0 %v1389
        %1399 = vmatmul.bf16.gmra.mxu0 %v1386
        %v1400 = vpop.f32.mrf.mxu0
        %v1401 = vadd.f32 0.0, %v1400
        %v1402 = vpop.f32.mrf.mxu0
        %v1403 = vadd.f32 0.0, %v1402
        %1404 = vdwg.mxu0
        %v1405 = vmul.f32 %v1401, 0.17677669
        %v1406 = vmul.f32 %v1403, 0.17677669
        %v1407 = vadd.f32 %v1405, %v999
        %v1408 = vadd.f32 %v1406, %v1000
        %v1409 = vsel %vm1308, %v1407, -inf
        %1410 = vmax.xlane.f32.xlu0 %v1409
        %v1411 = vpop.xlane.xlu0 %1410
        %v1412 = vsel %vm1308, %v1408, -inf
        %1413 = vmax.xlane.f32.xlu0 %v1412
        %v1414 = vpop.xlane.xlu0 %1413
        %v1415 = vsub.f32 %v1407, %v1411
        %v1416 = vsub.f32 %v1408, %v1414
        %v1417 = vmul.f32 %v1415, 1.442695
        %v1418 = vpow.pop %v1417
        %v1419 = vmul.f32 %v1416, 1.442695
        %v1420 = vpow.pop %v1419
        %v1421 = vsel %vm1308, %v1418, 0.0
        %1422 = vadd.xlane.f32.xlu0 %v1421
        %v1423 = vpop.xlane.xlu0 %1422
        %v1424 = vsel %vm1308, %v1420, 0.0
        %1425 = vadd.xlane.f32.xlu0 %v1424
        %v1426 = vpop.xlane.xlu0 %1425
        %v1427 = vrcp.pop %v1423
        %v1428 = vmul.f32 %v1423, %v1427
        %v1429 = vsub.f32 1.0, %v1428
        %v1430 = vmul.f32 %v1427, %v1429
        %v1431 = vadd.f32 %v1427, %v1430
        %vm1432 = vweird.f32 %v1423
        %vm1433 = vweird.f32 %v1427
        %vm1434 = vmor %vm1432, %vm1433
        %v1435 = vsel %vm1434, %v1427, %v1431
        %v1436 = vand.u32 2147483647, %v1423
        %vm1437 = vcmp.eq.f32.partialorder %v1436, 8.507059e+37
        %v1438 = vand.u32 %v1423, 2147483648
        %v1439 = vor.u32 1.1754944e-38, %v1438
        %v1440 = vsel %vm1437, %v1439, %v1435
        %v1441 = vmul.f32 %v1418, %v1440
        %v1442 = vrcp.pop %v1426
        %v1443 = vmul.f32 %v1426, %v1442
        %v1444 = vsub.f32 1.0, %v1443
        %v1445 = vmul.f32 %v1442, %v1444
        %v1446 = vadd.f32 %v1442, %v1445
        %vm1447 = vweird.f32 %v1426
        %vm1448 = vweird.f32 %v1442
        %vm1449 = vmor %vm1447, %vm1448
        %v1450 = vsel %vm1449, %v1442, %v1446
        %v1451 = vand.u32 2147483647, %v1426
        %vm1452 = vcmp.eq.f32.partialorder %v1451, 8.507059e+37
        %v1453 = vand.u32 %v1426, 2147483648
        %v1454 = vor.u32 1.1754944e-38, %v1453
        %v1455 = vsel %vm1452, %v1454, %v1450
        %v1456 = vmul.f32 %v1420, %v1455
        %v1457 = vpack.c.bf16 %v1456, %v1441
        %1458 = vrot.lane.b32.xlu0 %v1362, 96
        %v1459 = vpop.permute.xlu0 %1458
        %v1462 = vsel %vm1308, %v1457, 0
        %1464 = vmatpush.bf16.msra.mxu0 0
        %1465 = vmatpush.bf16.msra.mxu0 0
        %1466 = vmatpush.bf16.msra.mxu0 0
        %1467 = vmatpush.bf16.msra.mxu0 0
        %1468 = vmatpush.bf16.msra.mxu0 0
        %1469 = vmatpush.bf16.msra.mxu0 0
        %1470 = vmatpush.bf16.msra.mxu0 0
        %1471 = vmatpush.bf16.msra.mxu0 %v1459
        %1472 = vmatmul.bf16.gmra.mxu0 %v1462
        %v1473 = vpop.f32.mrf.mxu0
        %v1474 = vadd.f32 0.0, %v1473
        %v1475 = vpop.f32.mrf.mxu0
        %v1476 = vadd.f32 0.0, %v1475
        %1477 = vdwg.mxu0
        %1478 = vrot.lane.b32.xlu0 %v1279, 64
        %v1479 = vpop.permute.xlu0 %1478
        %1480 = vrot.lane.b32.xlu0 %v1282, 64
        %v1481 = vpop.permute.xlu0 %1480
        %v1483 = vsel %vm1283, %v1479, 0
        %v1486 = vsel %vm1283, %v1481, 0
        %1488 = vmatpush.bf16.xpose.msra.mxu0 0
        %1489 = vmatpush.bf16.xpose.msra.mxu0 0
        %1490 = vmatpush.bf16.xpose.msra.mxu0 0
        %1491 = vmatpush.bf16.xpose.msra.mxu0 0
        %1492 = vmatpush.bf16.xpose.msra.mxu0 0
        %1493 = vmatpush.bf16.xpose.msra.mxu0 0
        %1494 = vmatpush.bf16.xpose.msra.mxu0 0
        %1495 = vmatpush.bf16.xpose.msra.mxu0 %v1486
        %1496 = vmatmul.bf16.gmra.mxu0 %v1483
        %v1497 = vpop.f32.mrf.mxu0
        %v1498 = vadd.f32 0.0, %v1497
        %v1499 = vpop.f32.mrf.mxu0
        %v1500 = vadd.f32 0.0, %v1499
        %1501 = vdwg.mxu0
        %v1502 = vmul.f32 %v1498, 0.17677669
        %v1503 = vmul.f32 %v1500, 0.17677669
        %v1504 = vadd.f32 %v1502, %v999
        %v1505 = vadd.f32 %v1503, %v1000
        %v1506 = vsel %vm1308, %v1504, -inf
        %1507 = vmax.xlane.f32.xlu0 %v1506
        %v1508 = vpop.xlane.xlu0 %1507
        %v1509 = vsel %vm1308, %v1505, -inf
        %1510 = vmax.xlane.f32.xlu0 %v1509
        %v1511 = vpop.xlane.xlu0 %1510
        %v1512 = vsub.f32 %v1504, %v1508
        %v1513 = vsub.f32 %v1505, %v1511
        %v1514 = vmul.f32 %v1512, 1.442695
        %v1515 = vpow.pop %v1514
        %v1516 = vmul.f32 %v1513, 1.442695
        %v1517 = vpow.pop %v1516
        %v1518 = vsel %vm1308, %v1515, 0.0
        %1519 = vadd.xlane.f32.xlu0 %v1518
        %v1520 = vpop.xlane.xlu0 %1519
        %v1521 = vsel %vm1308, %v1517, 0.0
        %1522 = vadd.xlane.f32.xlu0 %v1521
        %v1523 = vpop.xlane.xlu0 %1522
        %v1524 = vrcp.pop %v1520
        %v1525 = vmul.f32 %v1520, %v1524
        %v1526 = vsub.f32 1.0, %v1525
        %v1527 = vmul.f32 %v1524, %v1526
        %v1528 = vadd.f32 %v1524, %v1527
        %vm1529 = vweird.f32 %v1520
        %vm1530 = vweird.f32 %v1524
        %vm1531 = vmor %vm1529, %vm1530
        %v1532 = vsel %vm1531, %v1524, %v1528
        %v1533 = vand.u32 2147483647, %v1520
        %vm1534 = vcmp.eq.f32.partialorder %v1533, 8.507059e+37
        %v1535 = vand.u32 %v1520, 2147483648
        %v1536 = vor.u32 1.1754944e-38, %v1535
        %v1537 = vsel %vm1534, %v1536, %v1532
        %v1538 = vmul.f32 %v1515, %v1537
        %v1539 = vrcp.pop %v1523
        %v1540 = vmul.f32 %v1523, %v1539
        %v1541 = vsub.f32 1.0, %v1540
        %v1542 = vmul.f32 %v1539, %v1541
        %v1543 = vadd.f32 %v1539, %v1542
        %vm1544 = vweird.f32 %v1523
        %vm1545 = vweird.f32 %v1539
        %vm1546 = vmor %vm1544, %vm1545
        %v1547 = vsel %vm1546, %v1539, %v1543
        %v1548 = vand.u32 2147483647, %v1523
        %vm1549 = vcmp.eq.f32.partialorder %v1548, 8.507059e+37
        %v1550 = vand.u32 %v1523, 2147483648
        %v1551 = vor.u32 1.1754944e-38, %v1550
        %v1552 = vsel %vm1549, %v1551, %v1547
        %v1553 = vmul.f32 %v1517, %v1552
        %v1554 = vpack.c.bf16 %v1553, %v1538
        %1555 = vrot.lane.b32.xlu0 %v1362, 64
        %v1556 = vpop.permute.xlu0 %1555
        %v1559 = vsel %vm1308, %v1554, 0
        %1561 = vmatpush.bf16.msra.mxu0 0
        %1562 = vmatpush.bf16.msra.mxu0 0
        %1563 = vmatpush.bf16.msra.mxu0 0
        %1564 = vmatpush.bf16.msra.mxu0 0
        %1565 = vmatpush.bf16.msra.mxu0 0
        %1566 = vmatpush.bf16.msra.mxu0 0
        %1567 = vmatpush.bf16.msra.mxu0 0
        %1568 = vmatpush.bf16.msra.mxu0 %v1556
        %1569 = vmatmul.bf16.gmra.mxu0 %v1559
        %v1570 = vpop.f32.mrf.mxu0
        %v1571 = vadd.f32 0.0, %v1570
        %v1572 = vpop.f32.mrf.mxu0
        %v1573 = vadd.f32 0.0, %v1572
        %1574 = vdwg.mxu0
        %1575 = vrot.lane.b32.xlu0 %v1279, 32
        %v1576 = vpop.permute.xlu0 %1575
        %1577 = vrot.lane.b32.xlu0 %v1282, 32
        %v1578 = vpop.permute.xlu0 %1577
        %v1580 = vsel %vm1283, %v1576, 0
        %v1583 = vsel %vm1283, %v1578, 0
        %1585 = vmatpush.bf16.xpose.msra.mxu0 0
        %1586 = vmatpush.bf16.xpose.msra.mxu0 0
        %1587 = vmatpush.bf16.xpose.msra.mxu0 0
        %1588 = vmatpush.bf16.xpose.msra.mxu0 0
        %1589 = vmatpush.bf16.xpose.msra.mxu0 0
        %1590 = vmatpush.bf16.xpose.msra.mxu0 0
        %1591 = vmatpush.bf16.xpose.msra.mxu0 0
        %1592 = vmatpush.bf16.xpose.msra.mxu0 %v1583
        %1593 = vmatmul.bf16.gmra.mxu0 %v1580
        %v1594 = vpop.f32.mrf.mxu0
        %v1595 = vadd.f32 0.0, %v1594
        %v1596 = vpop.f32.mrf.mxu0
        %v1597 = vadd.f32 0.0, %v1596
        %1598 = vdwg.mxu0
        %v1599 = vmul.f32 %v1595, 0.17677669
        %v1600 = vmul.f32 %v1597, 0.17677669
        %v1601 = vadd.f32 %v1599, %v999
        %v1602 = vadd.f32 %v1600, %v1000
        %v1603 = vsel %vm1308, %v1601, -inf
        %1604 = vmax.xlane.f32.xlu0 %v1603
        %v1605 = vpop.xlane.xlu0 %1604
        %v1606 = vsel %vm1308, %v1602, -inf
        %1607 = vmax.xlane.f32.xlu0 %v1606
        %v1608 = vpop.xlane.xlu0 %1607
        %v1609 = vsub.f32 %v1601, %v1605
        %v1610 = vsub.f32 %v1602, %v1608
        %v1611 = vmul.f32 %v1609, 1.442695
        %v1612 = vpow.pop %v1611
        %v1613 = vmul.f32 %v1610, 1.442695
        %v1614 = vpow.pop %v1613
        %v1615 = vsel %vm1308, %v1612, 0.0
        %1616 = vadd.xlane.f32.xlu0 %v1615
        %v1617 = vpop.xlane.xlu0 %1616
        %v1618 = vsel %vm1308, %v1614, 0.0
        %1619 = vadd.xlane.f32.xlu0 %v1618
        %v1620 = vpop.xlane.xlu0 %1619
        %v1621 = vrcp.pop %v1617
        %v1622 = vmul.f32 %v1617, %v1621
        %v1623 = vsub.f32 1.0, %v1622
        %v1624 = vmul.f32 %v1621, %v1623
        %v1625 = vadd.f32 %v1621, %v1624
        %vm1626 = vweird.f32 %v1617
        %vm1627 = vweird.f32 %v1621
        %vm1628 = vmor %vm1626, %vm1627
        %v1629 = vsel %vm1628, %v1621, %v1625
        %v1630 = vand.u32 2147483647, %v1617
        %vm1631 = vcmp.eq.f32.partialorder %v1630, 8.507059e+37
        %v1632 = vand.u32 %v1617, 2147483648
        %v1633 = vor.u32 1.1754944e-38, %v1632
        %v1634 = vsel %vm1631, %v1633, %v1629
        %v1635 = vmul.f32 %v1612, %v1634
        %v1636 = vrcp.pop %v1620
        %v1637 = vmul.f32 %v1620, %v1636
        %v1638 = vsub.f32 1.0, %v1637
        %v1639 = vmul.f32 %v1636, %v1638
        %v1640 = vadd.f32 %v1636, %v1639
        %vm1641 = vweird.f32 %v1620
        %vm1642 = vweird.f32 %v1636
        %vm1643 = vmor %vm1641, %vm1642
        %v1644 = vsel %vm1643, %v1636, %v1640
        %v1645 = vand.u32 2147483647, %v1620
        %vm1646 = vcmp.eq.f32.partialorder %v1645, 8.507059e+37
        %v1647 = vand.u32 %v1620, 2147483648
        %v1648 = vor.u32 1.1754944e-38, %v1647
        %v1649 = vsel %vm1646, %v1648, %v1644
        %v1650 = vmul.f32 %v1614, %v1649
        %v1651 = vpack.c.bf16 %v1650, %v1635
        %1652 = vrot.lane.b32.xlu0 %v1362, 32
        %v1653 = vpop.permute.xlu0 %1652
        %v1656 = vsel %vm1308, %v1651, 0
        %1658 = vmatpush.bf16.msra.mxu0 0
        %1659 = vmatpush.bf16.msra.mxu0 0
        %1660 = vmatpush.bf16.msra.mxu0 0
        %1661 = vmatpush.bf16.msra.mxu0 0
        %1662 = vmatpush.bf16.msra.mxu0 0
        %1663 = vmatpush.bf16.msra.mxu0 0
        %1664 = vmatpush.bf16.msra.mxu0 0
        %1665 = vmatpush.bf16.msra.mxu0 %v1653
        %1666 = vmatmul.bf16.gmra.mxu0 %v1656
        %v1667 = vpop.f32.mrf.mxu0
        %v1668 = vadd.f32 0.0, %v1667
        %v1669 = vpop.f32.mrf.mxu0
        %v1670 = vadd.f32 0.0, %v1669
        %1671 = vdwg.mxu0
        %1674 = vrot.lane.b32.xlu0 %v1474, 32
        %v1675 = vpop.permute.xlu0 %1674
        %1676 = vrot.lane.b32.xlu0 %v1476, 32
        %v1677 = vpop.permute.xlu0 %1676
        %1682 = vrot.lane.b32.xlu0 %v1571, 64
        %v1683 = vpop.permute.xlu0 %1682
        %1684 = vrot.lane.b32.xlu0 %v1573, 64
        %v1685 = vpop.permute.xlu0 %1684
        %1690 = vrot.lane.b32.xlu0 %v1668, 96
        %v1691 = vpop.permute.xlu0 %1690
        %1692 = vrot.lane.b32.xlu0 %v1670, 96
        %v1693 = vpop.permute.xlu0 %1692
        %v1696 = vsel %vm1283, %v1377, %v1675
        %v1697 = vsel %vm1283, %v1379, %v1677
        %vm1698 = vcmask 523264
        %v1699 = vsel %vm1698, %v1696, %v1683
        %v1700 = vsel %vm1698, %v1697, %v1685
        %vm1701 = vcmask 785408
        %v1702 = vsel %vm1701, %v1699, %v1691
        %v1703 = vsel %vm1701, %v1700, %v1693
        %v1704 = vpack.c.bf16 %v1703, %v1702
        %v1705 = vld [vmem:[%s709] sm:$0xf]
        %v1706 = vld [vmem:[%s709 + $0x4] sm:$0xf]
        %v1707 = vld [vmem:[%s709 + $0x8] sm:$0xf]
        %v1708 = vld [vmem:[%s709 + $0xc] sm:$0xf]
        %v1709 = vld [vmem:[%s709 + $0x10] sm:$0xf]
        %v1710 = vld [vmem:[%s709 + $0x14] sm:$0xf]
        %v1711 = vld [vmem:[%s709 + $0x18] sm:$0xf]
        %v1712 = vld [vmem:[%s709 + $0x1c] sm:$0xf]
        %v1713 = vld [vmem:[%s709 + $0x20] sm:$0xf]
        %v1714 = vld [vmem:[%s709 + $0x24] sm:$0xf]
        %v1715 = vld [vmem:[%s709 + $0x28] sm:$0xf]
        %v1716 = vld [vmem:[%s709 + $0x2c] sm:$0xf]
        %v1717 = vld [vmem:[%s709 + $0x30] sm:$0xf]
        %v1718 = vld [vmem:[%s709 + $0x34] sm:$0xf]
        %v1719 = vld [vmem:[%s709 + $0x38] sm:$0xf]
        %v1720 = vld [vmem:[%s709 + $0x3c] sm:$0xf]
        %v1737 = vunpack.c.l.b16 %v1705
        %v1738 = vunpack.c.l.b16 %v1706
        %v1739 = vunpack.c.l.b16 %v1707
        %v1740 = vunpack.c.l.b16 %v1708
        %v1741 = vunpack.c.l.b16 %v1709
        %v1742 = vunpack.c.l.b16 %v1710
        %v1743 = vunpack.c.l.b16 %v1711
        %v1744 = vunpack.c.l.b16 %v1712
        %v1745 = vunpack.c.l.b16 %v1713
        %v1746 = vunpack.c.l.b16 %v1714
        %v1747 = vunpack.c.l.b16 %v1715
        %v1748 = vunpack.c.l.b16 %v1716
        %v1749 = vunpack.c.l.b16 %v1717
        %v1750 = vunpack.c.l.b16 %v1718
        %v1751 = vunpack.c.l.b16 %v1719
        %v1752 = vunpack.c.l.b16 %v1720
        %v1753 = vpack.c.b16 %v1738, %v1737
        %v1754 = vpack.c.b16 %v1740, %v1739
        %v1755 = vpack.c.b16 %v1742, %v1741
        %v1756 = vpack.c.b16 %v1744, %v1743
        %v1757 = vpack.c.b16 %v1746, %v1745
        %v1758 = vpack.c.b16 %v1748, %v1747
        %v1759 = vpack.c.b16 %v1750, %v1749
        %v1760 = vpack.c.b16 %v1752, %v1751
        %1769 = vmatpush.bf16.msra.mxu0 %v1760
        %1770 = vmatpush.bf16.msra.mxu0 %v1759
        %1771 = vmatpush.bf16.msra.mxu0 %v1758
        %1772 = vmatpush.bf16.msra.mxu0 %v1757
        %1773 = vmatpush.bf16.msra.mxu0 %v1756
        %1774 = vmatpush.bf16.msra.mxu0 %v1755
        %1775 = vmatpush.bf16.msra.mxu0 %v1754
        %1776 = vmatpush.bf16.msra.mxu0 %v1753
        %1777 = vmatmul.bf16.gmra.mxu0 %v1704
        %v1778 = vpop.f32.mrf.mxu0
        %v1779 = vadd.f32 0.0, %v1778
        %v1780 = vpop.f32.mrf.mxu0
        %v1781 = vadd.f32 0.0, %v1780
        %1782 = vdwg.mxu0
        %v1783 = vadd.f32 %v997, %v1779
        %v1784 = vadd.f32 %v998, %v1781
        %v1785 = vld [vmem:[%s835] sm:$0x1]
        %v1787 = vperm.slane %v1785, 0
        %v1789 = vadd.f32 %v1783, %v1787
        %v1790 = vadd.f32 %v1784, %v1787
        %v1791 = vld [vmem:[%s838] sm:$0x1]
        %v1792 = vld [vmem:[%s841] sm:$0x1]
        %1793 = vadd.xlane.f32.xlu0 %v1789
        %v1794 = vpop.xlane.xlu0 %1793
        %1795 = vadd.xlane.f32.xlu0 %v1790
        %v1796 = vpop.xlane.xlu0 %1795
        %v1797 = vmul.f32 %v1794, %v1013
        %v1798 = vmul.f32 %v1796, %v1013
        %v1799 = vsub.f32 %v1789, %v1797
        %v1800 = vsub.f32 %v1790, %v1798
        %v1801 = vmul.f32 %v1799, %v1799
        %v1802 = vmul.f32 %v1800, %v1800
        %1803 = vadd.xlane.f32.xlu0 %v1801
        %v1804 = vpop.xlane.xlu0 %1803
        %1805 = vadd.xlane.f32.xlu0 %v1802
        %v1806 = vpop.xlane.xlu0 %1805
        %v1807 = vmul.f32 %v1804, %v1013
        %v1808 = vmul.f32 %v1806, %v1013
        %v1809 = vadd.f32 %v1807, 1e-06
        %v1810 = vadd.f32 %v1808, 1e-06
        %v1811 = vrsqrt.pop %v1809
        %v1812 = vmul.f32 %v1811, %v1809
        %v1813 = vmul.f32 %v1812, %v1811
        %v1814 = vmul.f32 0.5, %v1813
        %v1815 = vsub.f32 1.5, %v1814
        %v1816 = vmul.f32 %v1811, %v1815
        %vm1817 = vweird.f32 %v1809
        %vm1818 = vweird.f32 %v1811
        %vm1819 = vmor %vm1817, %vm1818
        %v1820 = vsel %vm1819, %v1811, %v1816
        %v1821 = vrsqrt.pop %v1810
        %v1822 = vmul.f32 %v1821, %v1810
        %v1823 = vmul.f32 %v1822, %v1821
        %v1824 = vmul.f32 0.5, %v1823
        %v1825 = vsub.f32 1.5, %v1824
        %v1826 = vmul.f32 %v1821, %v1825
        %vm1827 = vweird.f32 %v1810
        %vm1828 = vweird.f32 %v1821
        %vm1829 = vmor %vm1827, %vm1828
        %v1830 = vsel %vm1829, %v1821, %v1826
        %v1831 = vmul.f32 %v1799, %v1820
        %v1832 = vmul.f32 %v1800, %v1830
        %v1834 = vperm.slane %v1791, 0
        %v1836 = vmul.f32 %v1831, %v1834
        %v1837 = vmul.f32 %v1832, %v1834
        %v1839 = vperm.slane %v1792, 0
        %v1841 = vadd.f32 %v1836, %v1839
        %v1842 = vadd.f32 %v1837, %v1839
        %v1843 = vpack.c.bf16 %v1842, %v1841
        %v1844 = vld [vmem:[%s846] sm:$0xff]
        %v1845 = vld [vmem:[%s846 + $0x8] sm:$0xff]
        %v1846 = vld [vmem:[%s846 + $0x10] sm:$0xff]
        %v1847 = vld [vmem:[%s846 + $0x18] sm:$0xff]
        %v1848 = vld [vmem:[%s846 + $0x20] sm:$0xff]
        %v1849 = vld [vmem:[%s846 + $0x28] sm:$0xff]
        %v1850 = vld [vmem:[%s846 + $0x30] sm:$0xff]
        %v1851 = vld [vmem:[%s846 + $0x38] sm:$0xff]
        %v1852 = vld [vmem:[%s846 + $0x40] sm:$0xff]
        %v1853 = vld [vmem:[%s846 + $0x48] sm:$0xff]
        %v1854 = vld [vmem:[%s846 + $0x50] sm:$0xff]
        %v1855 = vld [vmem:[%s846 + $0x58] sm:$0xff]
        %v1856 = vld [vmem:[%s846 + $0x60] sm:$0xff]
        %v1857 = vld [vmem:[%s846 + $0x68] sm:$0xff]
        %v1858 = vld [vmem:[%s846 + $0x70] sm:$0xff]
        %v1859 = vld [vmem:[%s846 + $0x78] sm:$0xff]
        %v1860 = vld [vmem:[%s846 + $0x80] sm:$0xff]
        %v1861 = vld [vmem:[%s846 + $0x88] sm:$0xff]
        %v1862 = vld [vmem:[%s846 + $0x90] sm:$0xff]
        %v1863 = vld [vmem:[%s846 + $0x98] sm:$0xff]
        %v1864 = vld [vmem:[%s846 + $0xa0] sm:$0xff]
        %v1865 = vld [vmem:[%s846 + $0xa8] sm:$0xff]
        %v1866 = vld [vmem:[%s846 + $0xb0] sm:$0xff]
        %v1867 = vld [vmem:[%s846 + $0xb8] sm:$0xff]
        %v1868 = vld [vmem:[%s846 + $0xc0] sm:$0xff]
        %v1869 = vld [vmem:[%s846 + $0xc8] sm:$0xff]
        %v1870 = vld [vmem:[%s846 + $0xd0] sm:$0xff]
        %v1871 = vld [vmem:[%s846 + $0xd8] sm:$0xff]
        %v1872 = vld [vmem:[%s846 + $0xe0] sm:$0xff]
        %v1873 = vld [vmem:[%s846 + $0xe8] sm:$0xff]
        %v1874 = vld [vmem:[%s846 + $0xf0] sm:$0xff]
        %v1875 = vld [vmem:[%s846 + $0xf8] sm:$0xff]
        %v1876 = vld [vmem:[%s850] sm:$0xf]
        %v1878 = vperm.slane %v1876, 0
        %v1879 = vperm.slane %v1876, 1
        %v1880 = vperm.slane %v1876, 2
        %v1881 = vperm.slane %v1876, 3
        %v1918 = vunpack.c.l.b16 %v1844
        %v1919 = vunpack.c.h.b16 %v1844
        %v1920 = vunpack.c.l.b16 %v1845
        %v1921 = vunpack.c.h.b16 %v1845
        %v1922 = vunpack.c.l.b16 %v1846
        %v1923 = vunpack.c.h.b16 %v1846
        %v1924 = vunpack.c.l.b16 %v1847
        %v1925 = vunpack.c.h.b16 %v1847
        %v1926 = vunpack.c.l.b16 %v1848
        %v1927 = vunpack.c.h.b16 %v1848
        %v1928 = vunpack.c.l.b16 %v1849
        %v1929 = vunpack.c.h.b16 %v1849
        %v1930 = vunpack.c.l.b16 %v1850
        %v1931 = vunpack.c.h.b16 %v1850
        %v1932 = vunpack.c.l.b16 %v1851
        %v1933 = vunpack.c.h.b16 %v1851
        %v1934 = vunpack.c.l.b16 %v1852
        %v1935 = vunpack.c.h.b16 %v1852
        %v1936 = vunpack.c.l.b16 %v1853
        %v1937 = vunpack.c.h.b16 %v1853
        %v1938 = vunpack.c.l.b16 %v1854
        %v1939 = vunpack.c.h.b16 %v1854
        %v1940 = vunpack.c.l.b16 %v1855
        %v1941 = vunpack.c.h.b16 %v1855
        %v1942 = vunpack.c.l.b16 %v1856
        %v1943 = vunpack.c.h.b16 %v1856
        %v1944 = vunpack.c.l.b16 %v1857
        %v1945 = vunpack.c.h.b16 %v1857
        %v1946 = vunpack.c.l.b16 %v1858
        %v1947 = vunpack.c.h.b16 %v1858
        %v1948 = vunpack.c.l.b16 %v1859
        %v1949 = vunpack.c.h.b16 %v1859
        %v1950 = vunpack.c.l.b16 %v1860
        %v1951 = vunpack.c.h.b16 %v1860
        %v1952 = vunpack.c.l.b16 %v1861
        %v1953 = vunpack.c.h.b16 %v1861
        %v1954 = vunpack.c.l.b16 %v1862
        %v1955 = vunpack.c.h.b16 %v1862
        %v1956 = vunpack.c.l.b16 %v1863
        %v1957 = vunpack.c.h.b16 %v1863
        %v1958 = vunpack.c.l.b16 %v1864
        %v1959 = vunpack.c.h.b16 %v1864
        %v1960 = vunpack.c.l.b16 %v1865
        %v1961 = vunpack.c.h.b16 %v1865
        %v1962 = vunpack.c.l.b16 %v1866
        %v1963 = vunpack.c.h.b16 %v1866
        %v1964 = vunpack.c.l.b16 %v1867
        %v1965 = vunpack.c.h.b16 %v1867
        %v1966 = vunpack.c.l.b16 %v1868
        %v1967 = vunpack.c.h.b16 %v1868
        %v1968 = vunpack.c.l.b16 %v1869
        %v1969 = vunpack.c.h.b16 %v1869
        %v1970 = vunpack.c.l.b16 %v1870
        %v1971 = vunpack.c.h.b16 %v1870
        %v1972 = vunpack.c.l.b16 %v1871
        %v1973 = vunpack.c.h.b16 %v1871
        %v1974 = vunpack.c.l.b16 %v1872
        %v1975 = vunpack.c.h.b16 %v1872
        %v1976 = vunpack.c.l.b16 %v1873
        %v1977 = vunpack.c.h.b16 %v1873
        %v1978 = vunpack.c.l.b16 %v1874
        %v1979 = vunpack.c.h.b16 %v1874
        %v1980 = vunpack.c.l.b16 %v1875
        %v1981 = vunpack.c.h.b16 %v1875
        %v1982 = vpack.c.b16 %v1922, %v1918
        %v1983 = vpack.c.b16 %v1923, %v1919
        %v1984 = vpack.c.b16 %v1924, %v1920
        %v1985 = vpack.c.b16 %v1925, %v1921
        %v1986 = vpack.c.b16 %v1930, %v1926
        %v1987 = vpack.c.b16 %v1931, %v1927
        %v1988 = vpack.c.b16 %v1932, %v1928
        %v1989 = vpack.c.b16 %v1933, %v1929
        %v1990 = vpack.c.b16 %v1938, %v1934
        %v1991 = vpack.c.b16 %v1939, %v1935
        %v1992 = vpack.c.b16 %v1940, %v1936
        %v1993 = vpack.c.b16 %v1941, %v1937
        %v1994 = vpack.c.b16 %v1946, %v1942
        %v1995 = vpack.c.b16 %v1947, %v1943
        %v1996 = vpack.c.b16 %v1948, %v1944
        %v1997 = vpack.c.b16 %v1949, %v1945
        %v1998 = vpack.c.b16 %v1954, %v1950
        %v1999 = vpack.c.b16 %v1955, %v1951
        %v2000 = vpack.c.b16 %v1956, %v1952
        %v2001 = vpack.c.b16 %v1957, %v1953
        %v2002 = vpack.c.b16 %v1962, %v1958
        %v2003 = vpack.c.b16 %v1963, %v1959
        %v2004 = vpack.c.b16 %v1964, %v1960
        %v2005 = vpack.c.b16 %v1965, %v1961
        %v2006 = vpack.c.b16 %v1970, %v1966
        %v2007 = vpack.c.b16 %v1971, %v1967
        %v2008 = vpack.c.b16 %v1972, %v1968
        %v2009 = vpack.c.b16 %v1973, %v1969
        %v2010 = vpack.c.b16 %v1978, %v1974
        %v2011 = vpack.c.b16 %v1979, %v1975
        %v2012 = vpack.c.b16 %v1980, %v1976
        %v2013 = vpack.c.b16 %v1981, %v1977
        %2046 = vmatpush.bf16.msra.mxu0 %v2010
        %2047 = vmatpush.bf16.msra.mxu0 %v2006
        %2048 = vmatpush.bf16.msra.mxu0 %v2002
        %2049 = vmatpush.bf16.msra.mxu0 %v1998
        %2050 = vmatpush.bf16.msra.mxu0 %v1994
        %2051 = vmatpush.bf16.msra.mxu0 %v1990
        %2052 = vmatpush.bf16.msra.mxu0 %v1986
        %2053 = vmatpush.bf16.msra.mxu0 %v1982
        %2054 = vmatmul.bf16.gmra.mxu0 %v1843
        %v2055 = vpop.f32.mrf.mxu0
        %v2056 = vadd.f32 %v1878, %v2055
        %v2057 = vpop.f32.mrf.mxu0
        %v2058 = vadd.f32 %v1878, %v2057
        %2059 = vdwg.mxu0
        %2060 = vmatpush.bf16.msra.mxu0 %v2011
        %2061 = vmatpush.bf16.msra.mxu0 %v2007
        %2062 = vmatpush.bf16.msra.mxu0 %v2003
        %2063 = vmatpush.bf16.msra.mxu0 %v1999
        %2064 = vmatpush.bf16.msra.mxu0 %v1995
        %2065 = vmatpush.bf16.msra.mxu0 %v1991
        %2066 = vmatpush.bf16.msra.mxu0 %v1987
        %2067 = vmatpush.bf16.msra.mxu0 %v1983
        %2068 = vmatmul.bf16.gmra.mxu0 %v1843
        %v2069 = vpop.f32.mrf.mxu0
        %v2070 = vadd.f32 %v1879, %v2069
        %v2071 = vpop.f32.mrf.mxu0
        %v2072 = vadd.f32 %v1879, %v2071
        %2073 = vdwg.mxu0
        %2074 = vmatpush.bf16.msra.mxu0 %v2012
        %2075 = vmatpush.bf16.msra.mxu0 %v2008
        %2076 = vmatpush.bf16.msra.mxu0 %v2004
        %2077 = vmatpush.bf16.msra.mxu0 %v2000
        %2078 = vmatpush.bf16.msra.mxu0 %v1996
        %2079 = vmatpush.bf16.msra.mxu0 %v1992
        %2080 = vmatpush.bf16.msra.mxu0 %v1988
        %2081 = vmatpush.bf16.msra.mxu0 %v1984
        %2082 = vmatmul.bf16.gmra.mxu0 %v1843
        %v2083 = vpop.f32.mrf.mxu0
        %v2084 = vadd.f32 %v1880, %v2083
        %v2085 = vpop.f32.mrf.mxu0
        %v2086 = vadd.f32 %v1880, %v2085
        %2087 = vdwg.mxu0
        %2088 = vmatpush.bf16.msra.mxu0 %v2013
        %2089 = vmatpush.bf16.msra.mxu0 %v2009
        %2090 = vmatpush.bf16.msra.mxu0 %v2005
        %2091 = vmatpush.bf16.msra.mxu0 %v2001
        %2092 = vmatpush.bf16.msra.mxu0 %v1997
        %2093 = vmatpush.bf16.msra.mxu0 %v1993
        %2094 = vmatpush.bf16.msra.mxu0 %v1989
        %2095 = vmatpush.bf16.msra.mxu0 %v1985
        %2096 = vmatmul.bf16.gmra.mxu0 %v1843
        %v2097 = vpop.f32.mrf.mxu0
        %v2098 = vadd.f32 %v1881, %v2097
        %v2099 = vpop.f32.mrf.mxu0
        %v2100 = vadd.f32 %v1881, %v2099
        %2101 = vdwg.mxu0
        %v2102 = vmul.f32 %v2056, %v2056
        %v2103 = vmul.f32 %v2070, %v2070
        %v2104 = vmul.f32 %v2084, %v2084
        %v2105 = vmul.f32 %v2098, %v2098
        %v2106 = vmul.f32 %v2058, %v2058
        %v2107 = vmul.f32 %v2072, %v2072
        %v2108 = vmul.f32 %v2086, %v2086
        %v2109 = vmul.f32 %v2100, %v2100
        %v2110 = vmul.f32 %v2056, %v2102
        %v2111 = vmul.f32 %v2070, %v2103
        %v2112 = vmul.f32 %v2084, %v2104
        %v2113 = vmul.f32 %v2098, %v2105
        %v2114 = vmul.f32 %v2058, %v2106
        %v2115 = vmul.f32 %v2072, %v2107
        %v2116 = vmul.f32 %v2086, %v2108
        %v2117 = vmul.f32 %v2100, %v2109
        %v2118 = vmul.f32 %v2110, 0.044715
        %v2119 = vmul.f32 %v2111, 0.044715
        %v2120 = vmul.f32 %v2112, 0.044715
        %v2121 = vmul.f32 %v2113, 0.044715
        %v2122 = vmul.f32 %v2114, 0.044715
        %v2123 = vmul.f32 %v2115, 0.044715
        %v2124 = vmul.f32 %v2116, 0.044715
        %v2125 = vmul.f32 %v2117, 0.044715
        %v2126 = vadd.f32 %v2056, %v2118
        %v2127 = vadd.f32 %v2070, %v2119
        %v2128 = vadd.f32 %v2084, %v2120
        %v2129 = vadd.f32 %v2098, %v2121
        %v2130 = vadd.f32 %v2058, %v2122
        %v2131 = vadd.f32 %v2072, %v2123
        %v2132 = vadd.f32 %v2086, %v2124
        %v2133 = vadd.f32 %v2100, %v2125
        %v2134 = vmul.f32 %v2126, 0.7978846
        %v2135 = vmul.f32 %v2127, 0.7978846
        %v2136 = vmul.f32 %v2128, 0.7978846
        %v2137 = vmul.f32 %v2129, 0.7978846
        %v2138 = vmul.f32 %v2130, 0.7978846
        %v2139 = vmul.f32 %v2131, 0.7978846
        %v2140 = vmul.f32 %v2132, 0.7978846
        %v2141 = vmul.f32 %v2133, 0.7978846
        %v2142 = vtanh.pop %v2134
        %v2143 = vtanh.pop %v2135
        %v2144 = vtanh.pop %v2136
        %v2145 = vtanh.pop %v2137
        %v2146 = vtanh.pop %v2138
        %v2147 = vtanh.pop %v2139
        %v2148 = vtanh.pop %v2140
        %v2149 = vtanh.pop %v2141
        %v2150 = vadd.f32 %v2142, 1.0
        %v2151 = vadd.f32 %v2143, 1.0
        %v2152 = vadd.f32 %v2144, 1.0
        %v2153 = vadd.f32 %v2145, 1.0
        %v2154 = vadd.f32 %v2146, 1.0
        %v2155 = vadd.f32 %v2147, 1.0
        %v2156 = vadd.f32 %v2148, 1.0
        %v2157 = vadd.f32 %v2149, 1.0
        %v2158 = vmul.f32 %v2150, 0.5
        %v2159 = vmul.f32 %v2151, 0.5
        %v2160 = vmul.f32 %v2152, 0.5
        %v2161 = vmul.f32 %v2153, 0.5
        %v2162 = vmul.f32 %v2154, 0.5
        %v2163 = vmul.f32 %v2155, 0.5
        %v2164 = vmul.f32 %v2156, 0.5
        %v2165 = vmul.f32 %v2157, 0.5
        %v2166 = vmul.f32 %v2056, %v2158
        %v2167 = vmul.f32 %v2070, %v2159
        %v2168 = vmul.f32 %v2084, %v2160
        %v2169 = vmul.f32 %v2098, %v2161
        %v2170 = vmul.f32 %v2058, %v2162
        %v2171 = vmul.f32 %v2072, %v2163
        %v2172 = vmul.f32 %v2086, %v2164
        %v2173 = vmul.f32 %v2100, %v2165
        %v2174 = vpack.c.bf16 %v2170, %v2166
        %v2175 = vpack.c.bf16 %v2171, %v2167
        %v2176 = vpack.c.bf16 %v2172, %v2168
        %v2177 = vpack.c.bf16 %v2173, %v2169
        %v2178 = vld [vmem:[%s719] sm:$0xf]
        %v2179 = vld [vmem:[%s719 + $0x4] sm:$0xf]
        %v2180 = vld [vmem:[%s719 + $0x8] sm:$0xf]
        %v2181 = vld [vmem:[%s719 + $0xc] sm:$0xf]
        %v2182 = vld [vmem:[%s719 + $0x10] sm:$0xf]
        %v2183 = vld [vmem:[%s719 + $0x14] sm:$0xf]
        %v2184 = vld [vmem:[%s719 + $0x18] sm:$0xf]
        %v2185 = vld [vmem:[%s719 + $0x1c] sm:$0xf]
        %v2186 = vld [vmem:[%s719 + $0x20] sm:$0xf]
        %v2187 = vld [vmem:[%s719 + $0x24] sm:$0xf]
        %v2188 = vld [vmem:[%s719 + $0x28] sm:$0xf]
        %v2189 = vld [vmem:[%s719 + $0x2c] sm:$0xf]
        %v2190 = vld [vmem:[%s719 + $0x30] sm:$0xf]
        %v2191 = vld [vmem:[%s719 + $0x34] sm:$0xf]
        %v2192 = vld [vmem:[%s719 + $0x38] sm:$0xf]
        %v2193 = vld [vmem:[%s719 + $0x3c] sm:$0xf]
        %v2194 = vld [vmem:[%s719 + $0x40] sm:$0xf]
        %v2195 = vld [vmem:[%s719 + $0x44] sm:$0xf]
        %v2196 = vld [vmem:[%s719 + $0x48] sm:$0xf]
        %v2197 = vld [vmem:[%s719 + $0x4c] sm:$0xf]
        %v2198 = vld [vmem:[%s719 + $0x50] sm:$0xf]
        %v2199 = vld [vmem:[%s719 + $0x54] sm:$0xf]
        %v2200 = vld [vmem:[%s719 + $0x58] sm:$0xf]
        %v2201 = vld [vmem:[%s719 + $0x5c] sm:$0xf]
        %v2202 = vld [vmem:[%s719 + $0x60] sm:$0xf]
        %v2203 = vld [vmem:[%s719 + $0x64] sm:$0xf]
        %v2204 = vld [vmem:[%s719 + $0x68] sm:$0xf]
        %v2205 = vld [vmem:[%s719 + $0x6c] sm:$0xf]
        %v2206 = vld [vmem:[%s719 + $0x70] sm:$0xf]
        %v2207 = vld [vmem:[%s719 + $0x74] sm:$0xf]
        %v2208 = vld [vmem:[%s719 + $0x78] sm:$0xf]
        %v2209 = vld [vmem:[%s719 + $0x7c] sm:$0xf]
        %v2210 = vld [vmem:[%s719 + $0x80] sm:$0xf]
        %v2211 = vld [vmem:[%s719 + $0x84] sm:$0xf]
        %v2212 = vld [vmem:[%s719 + $0x88] sm:$0xf]
        %v2213 = vld [vmem:[%s719 + $0x8c] sm:$0xf]
        %v2214 = vld [vmem:[%s719 + $0x90] sm:$0xf]
        %v2215 = vld [vmem:[%s719 + $0x94] sm:$0xf]
        %v2216 = vld [vmem:[%s719 + $0x98] sm:$0xf]
        %v2217 = vld [vmem:[%s719 + $0x9c] sm:$0xf]
        %v2218 = vld [vmem:[%s719 + $0xa0] sm:$0xf]
        %v2219 = vld [vmem:[%s719 + $0xa4] sm:$0xf]
        %v2220 = vld [vmem:[%s719 + $0xa8] sm:$0xf]
        %v2221 = vld [vmem:[%s719 + $0xac] sm:$0xf]
        %v2222 = vld [vmem:[%s719 + $0xb0] sm:$0xf]
        %v2223 = vld [vmem:[%s719 + $0xb4] sm:$0xf]
        %v2224 = vld [vmem:[%s719 + $0xb8] sm:$0xf]
        %v2225 = vld [vmem:[%s719 + $0xbc] sm:$0xf]
        %v2226 = vld [vmem:[%s719 + $0xc0] sm:$0xf]
        %v2227 = vld [vmem:[%s719 + $0xc4] sm:$0xf]
        %v2228 = vld [vmem:[%s719 + $0xc8] sm:$0xf]
        %v2229 = vld [vmem:[%s719 + $0xcc] sm:$0xf]
        %v2230 = vld [vmem:[%s719 + $0xd0] sm:$0xf]
        %v2231 = vld [vmem:[%s719 + $0xd4] sm:$0xf]
        %v2232 = vld [vmem:[%s719 + $0xd8] sm:$0xf]
        %v2233 = vld [vmem:[%s719 + $0xdc] sm:$0xf]
        %v2234 = vld [vmem:[%s719 + $0xe0] sm:$0xf]
        %v2235 = vld [vmem:[%s719 + $0xe4] sm:$0xf]
        %v2236 = vld [vmem:[%s719 + $0xe8] sm:$0xf]
        %v2237 = vld [vmem:[%s719 + $0xec] sm:$0xf]
        %v2238 = vld [vmem:[%s719 + $0xf0] sm:$0xf]
        %v2239 = vld [vmem:[%s719 + $0xf4] sm:$0xf]
        %v2240 = vld [vmem:[%s719 + $0xf8] sm:$0xf]
        %v2241 = vld [vmem:[%s719 + $0xfc] sm:$0xf]
        %v2306 = vunpack.c.l.b16 %v2178
        %v2307 = vunpack.c.l.b16 %v2179
        %v2308 = vunpack.c.l.b16 %v2180
        %v2309 = vunpack.c.l.b16 %v2181
        %v2310 = vunpack.c.l.b16 %v2182
        %v2311 = vunpack.c.l.b16 %v2183
        %v2312 = vunpack.c.l.b16 %v2184
        %v2313 = vunpack.c.l.b16 %v2185
        %v2314 = vunpack.c.l.b16 %v2186
        %v2315 = vunpack.c.l.b16 %v2187
        %v2316 = vunpack.c.l.b16 %v2188
        %v2317 = vunpack.c.l.b16 %v2189
        %v2318 = vunpack.c.l.b16 %v2190
        %v2319 = vunpack.c.l.b16 %v2191
        %v2320 = vunpack.c.l.b16 %v2192
        %v2321 = vunpack.c.l.b16 %v2193
        %v2322 = vunpack.c.l.b16 %v2194
        %v2323 = vunpack.c.l.b16 %v2195
        %v2324 = vunpack.c.l.b16 %v2196
        %v2325 = vunpack.c.l.b16 %v2197
        %v2326 = vunpack.c.l.b16 %v2198
        %v2327 = vunpack.c.l.b16 %v2199
        %v2328 = vunpack.c.l.b16 %v2200
        %v2329 = vunpack.c.l.b16 %v2201
        %v2330 = vunpack.c.l.b16 %v2202
        %v2331 = vunpack.c.l.b16 %v2203
        %v2332 = vunpack.c.l.b16 %v2204
        %v2333 = vunpack.c.l.b16 %v2205
        %v2334 = vunpack.c.l.b16 %v2206
        %v2335 = vunpack.c.l.b16 %v2207
        %v2336 = vunpack.c.l.b16 %v2208
        %v2337 = vunpack.c.l.b16 %v2209
        %v2338 = vunpack.c.l.b16 %v2210
        %v2339 = vunpack.c.l.b16 %v2211
        %v2340 = vunpack.c.l.b16 %v2212
        %v2341 = vunpack.c.l.b16 %v2213
        %v2342 = vunpack.c.l.b16 %v2214
        %v2343 = vunpack.c.l.b16 %v2215
        %v2344 = vunpack.c.l.b16 %v2216
        %v2345 = vunpack.c.l.b16 %v2217
        %v2346 = vunpack.c.l.b16 %v2218
        %v2347 = vunpack.c.l.b16 %v2219
        %v2348 = vunpack.c.l.b16 %v2220
        %v2349 = vunpack.c.l.b16 %v2221
        %v2350 = vunpack.c.l.b16 %v2222
        %v2351 = vunpack.c.l.b16 %v2223
        %v2352 = vunpack.c.l.b16 %v2224
        %v2353 = vunpack.c.l.b16 %v2225
        %v2354 = vunpack.c.l.b16 %v2226
        %v2355 = vunpack.c.l.b16 %v2227
        %v2356 = vunpack.c.l.b16 %v2228
        %v2357 = vunpack.c.l.b16 %v2229
        %v2358 = vunpack.c.l.b16 %v2230
        %v2359 = vunpack.c.l.b16 %v2231
        %v2360 = vunpack.c.l.b16 %v2232
        %v2361 = vunpack.c.l.b16 %v2233
        %v2362 = vunpack.c.l.b16 %v2234
        %v2363 = vunpack.c.l.b16 %v2235
        %v2364 = vunpack.c.l.b16 %v2236
        %v2365 = vunpack.c.l.b16 %v2237
        %v2366 = vunpack.c.l.b16 %v2238
        %v2367 = vunpack.c.l.b16 %v2239
        %v2368 = vunpack.c.l.b16 %v2240
        %v2369 = vunpack.c.l.b16 %v2241
        %v2370 = vpack.c.b16 %v2307, %v2306
        %v2371 = vpack.c.b16 %v2309, %v2308
        %v2372 = vpack.c.b16 %v2311, %v2310
        %v2373 = vpack.c.b16 %v2313, %v2312
        %v2374 = vpack.c.b16 %v2315, %v2314
        %v2375 = vpack.c.b16 %v2317, %v2316
        %v2376 = vpack.c.b16 %v2319, %v2318
        %v2377 = vpack.c.b16 %v2321, %v2320
        %v2378 = vpack.c.b16 %v2323, %v2322
        %v2379 = vpack.c.b16 %v2325, %v2324
        %v2380 = vpack.c.b16 %v2327, %v2326
        %v2381 = vpack.c.b16 %v2329, %v2328
        %v2382 = vpack.c.b16 %v2331, %v2330
        %v2383 = vpack.c.b16 %v2333, %v2332
        %v2384 = vpack.c.b16 %v2335, %v2334
        %v2385 = vpack.c.b16 %v2337, %v2336
        %v2386 = vpack.c.b16 %v2339, %v2338
        %v2387 = vpack.c.b16 %v2341, %v2340
        %v2388 = vpack.c.b16 %v2343, %v2342
        %v2389 = vpack.c.b16 %v2345, %v2344
        %v2390 = vpack.c.b16 %v2347, %v2346
        %v2391 = vpack.c.b16 %v2349, %v2348
        %v2392 = vpack.c.b16 %v2351, %v2350
        %v2393 = vpack.c.b16 %v2353, %v2352
        %v2394 = vpack.c.b16 %v2355, %v2354
        %v2395 = vpack.c.b16 %v2357, %v2356
        %v2396 = vpack.c.b16 %v2359, %v2358
        %v2397 = vpack.c.b16 %v2361, %v2360
        %v2398 = vpack.c.b16 %v2363, %v2362
        %v2399 = vpack.c.b16 %v2365, %v2364
        %v2400 = vpack.c.b16 %v2367, %v2366
        %v2401 = vpack.c.b16 %v2369, %v2368
        %2434 = vmatpush.bf16.msra.mxu0 %v2377
        %2435 = vmatpush.bf16.msra.mxu0 %v2376
        %2436 = vmatpush.bf16.msra.mxu0 %v2375
        %2437 = vmatpush.bf16.msra.mxu0 %v2374
        %2438 = vmatpush.bf16.msra.mxu0 %v2373
        %2439 = vmatpush.bf16.msra.mxu0 %v2372
        %2440 = vmatpush.bf16.msra.mxu0 %v2371
        %2441 = vmatpush.bf16.msra.mxu0 %v2370
        %2442 = vmatmul.bf16.gmra.mxu0 %v2174
        %v2443 = vpop.f32.mrf.mxu0
        %v2444 = vadd.f32 0.0, %v2443
        %v2445 = vpop.f32.mrf.mxu0
        %v2446 = vadd.f32 0.0, %v2445
        %2447 = vdwg.mxu0
        %2448 = vmatpush.bf16.msra.mxu0 %v2385
        %2449 = vmatpush.bf16.msra.mxu0 %v2384
        %2450 = vmatpush.bf16.msra.mxu0 %v2383
        %2451 = vmatpush.bf16.msra.mxu0 %v2382
        %2452 = vmatpush.bf16.msra.mxu0 %v2381
        %2453 = vmatpush.bf16.msra.mxu0 %v2380
        %2454 = vmatpush.bf16.msra.mxu0 %v2379
        %2455 = vmatpush.bf16.msra.mxu0 %v2378
        %2456 = vmatmul.bf16.gmra.mxu0 %v2175
        %v2457 = vpop.f32.mrf.mxu0
        %v2458 = vadd.f32 %v2444, %v2457
        %v2459 = vpop.f32.mrf.mxu0
        %v2460 = vadd.f32 %v2446, %v2459
        %2461 = vdwg.mxu0
        %2462 = vmatpush.bf16.msra.mxu0 %v2393
        %2463 = vmatpush.bf16.msra.mxu0 %v2392
        %2464 = vmatpush.bf16.msra.mxu0 %v2391
        %2465 = vmatpush.bf16.msra.mxu0 %v2390
        %2466 = vmatpush.bf16.msra.mxu0 %v2389
        %2467 = vmatpush.bf16.msra.mxu0 %v2388
        %2468 = vmatpush.bf16.msra.mxu0 %v2387
        %2469 = vmatpush.bf16.msra.mxu0 %v2386
        %2470 = vmatmul.bf16.gmra.mxu0 %v2176
        %v2471 = vpop.f32.mrf.mxu0
        %v2472 = vadd.f32 %v2458, %v2471
        %v2473 = vpop.f32.mrf.mxu0
        %v2474 = vadd.f32 %v2460, %v2473
        %2475 = vdwg.mxu0
        %2476 = vmatpush.bf16.msra.mxu0 %v2401
        %2477 = vmatpush.bf16.msra.mxu0 %v2400
        %2478 = vmatpush.bf16.msra.mxu0 %v2399
        %2479 = vmatpush.bf16.msra.mxu0 %v2398
        %2480 = vmatpush.bf16.msra.mxu0 %v2397
        %2481 = vmatpush.bf16.msra.mxu0 %v2396
        %2482 = vmatpush.bf16.msra.mxu0 %v2395
        %2483 = vmatpush.bf16.msra.mxu0 %v2394
        %2484 = vmatmul.bf16.gmra.mxu0 %v2177
        %v2485 = vpop.f32.mrf.mxu0
        %v2486 = vadd.f32 %v2472, %v2485
        %v2487 = vpop.f32.mrf.mxu0
        %v2488 = vadd.f32 %v2474, %v2487
        %2489 = vdwg.mxu0
        %v2490 = vadd.f32 %v1789, %v2486
        %v2491 = vadd.f32 %v1790, %v2488
        %v2492 = vld [vmem:[%s853] sm:$0x1]
        %v2494 = vperm.slane %v2492, 0
        %v2496 = vadd.f32 %v2490, %v2494
        %v2497 = vadd.f32 %v2491, %v2494
        %2498 = vst [vmem:[#allocation2] sm:$0xff] %v2496
        %2499 = vst [vmem:[#allocation2 + $0x8] sm:$0xff] %v2497
        %p2500 = scmp.eq.s32.totalorder %s38, 1
        // Predicated region
        $region117: #{vit_forward.1} parent=99 // pred_check
          %p2501 = pneg %p2500
        $region118: #{vit_forward.1} parent=99 // pred_check_branch
          %2503 = sbr.rel (%p2501) target = $region120
        $region119: #{vit_forward.1} parent=99 // pred_region
          %v2505 = vrot.slane %v2497, 7
          %vm2507 = vcmask 1040384
          %v2508 = vsel %vm2507, %v2496, %v2505
          %v2509 = vld [vmem:[%s16] sm:$0x1]
          %v2510 = vld [vmem:[%s17] sm:$0x1]
          %vm2511 = vcmask 1041408
          %v2512 = vsel %vm2511, %v2508, 0.0
          %2513 = vadd.xlane.f32.xlu0 %v2512
          %v2514 = vpop.xlane.xlu0 %2513
          %v2515 = vmul.f32 %v2514, %v1013
          %v2516 = vsub.f32 %v2508, %v2515
          %v2517 = vmul.f32 %v2516, %v2516
          %v2518 = vsel %vm2511, %v2517, 0.0
          %2519 = vadd.xlane.f32.xlu0 %v2518
          %v2520 = vpop.xlane.xlu0 %2519
          %v2521 = vmul.f32 %v2520, %v1013
          %v2522 = vadd.f32 %v2521, 1e-06
          %v2523 = vrsqrt.pop %v2522
          %v2524 = vmul.f32 %v2523, %v2522
          %v2525 = vmul.f32 %v2524, %v2523
          %v2526 = vmul.f32 0.5, %v2525
          %v2527 = vsub.f32 1.5, %v2526
          %v2528 = vmul.f32 %v2523, %v2527
          %vm2529 = vweird.f32 %v2522
          %vm2530 = vweird.f32 %v2523
          %vm2531 = vmor %vm2529, %vm2530
          %v2532 = vsel %vm2531, %v2523, %v2528
          %v2533 = vmul.f32 %v2516, %v2532
          %v2535 = vperm.slane %v2509, 0
          %v2537 = vmul.f32 %v2533, %v2535
          %v2539 = vperm.slane %v2510, 0
          %v2541 = vadd.f32 %v2537, %v2539
          %v2542 = vpack.c.bf16 %v2541, %v2541
          %v2543 = vld [vmem:[#allocation8] sm:$0xf]
          %v2544 = vld [vmem:[#allocation8 + $0x4] sm:$0xf]
          %v2545 = vld [vmem:[#allocation8 + $0x8] sm:$0xf]
          %v2546 = vld [vmem:[#allocation8 + $0xc] sm:$0xf]
          %v2547 = vld [vmem:[#allocation8 + $0x10] sm:$0xf]
          %v2548 = vld [vmem:[#allocation8 + $0x14] sm:$0xf]
          %v2549 = vld [vmem:[#allocation8 + $0x18] sm:$0xf]
          %v2550 = vld [vmem:[#allocation8 + $0x1c] sm:$0xf]
          %v2551 = vld [vmem:[#allocation8 + $0x20] sm:$0xf]
          %v2552 = vld [vmem:[#allocation8 + $0x24] sm:$0xf]
          %v2553 = vld [vmem:[#allocation8 + $0x28] sm:$0xf]
          %v2554 = vld [vmem:[#allocation8 + $0x2c] sm:$0xf]
          %v2555 = vld [vmem:[#allocation8 + $0x30] sm:$0xf]
          %v2556 = vld [vmem:[#allocation8 + $0x34] sm:$0xf]
          %v2557 = vld [vmem:[#allocation8 + $0x38] sm:$0xf]
          %v2558 = vld [vmem:[#allocation8 + $0x3c] sm:$0xf]
          %v2559 = vld [vmem:[%s19] sm:$0x1]
          %v2561 = vperm.slane %v2559, 0
          %v2579 = vunpack.c.l.b16 %v2543
          %v2580 = vunpack.c.l.b16 %v2544
          %v2581 = vunpack.c.l.b16 %v2545
          %v2582 = vunpack.c.l.b16 %v2546
          %v2583 = vunpack.c.l.b16 %v2547
          %v2584 = vunpack.c.l.b16 %v2548
          %v2585 = vunpack.c.l.b16 %v2549
          %v2586 = vunpack.c.l.b16 %v2550
          %v2587 = vunpack.c.l.b16 %v2551
          %v2588 = vunpack.c.l.b16 %v2552
          %v2589 = vunpack.c.l.b16 %v2553
          %v2590 = vunpack.c.l.b16 %v2554
          %v2591 = vunpack.c.l.b16 %v2555
          %v2592 = vunpack.c.l.b16 %v2556
          %v2593 = vunpack.c.l.b16 %v2557
          %v2594 = vunpack.c.l.b16 %v2558
          %v2595 = vpack.c.b16 %v2580, %v2579
          %v2596 = vpack.c.b16 %v2582, %v2581
          %v2597 = vpack.c.b16 %v2584, %v2583
          %v2598 = vpack.c.b16 %v2586, %v2585
          %v2599 = vpack.c.b16 %v2588, %v2587
          %v2600 = vpack.c.b16 %v2590, %v2589
          %v2601 = vpack.c.b16 %v2592, %v2591
          %v2602 = vpack.c.b16 %v2594, %v2593
          %2611 = vmatpush.bf16.msra.mxu0 %v2602
          %2612 = vmatpush.bf16.msra.mxu0 %v2601
          %2613 = vmatpush.bf16.msra.mxu0 %v2600
          %2614 = vmatpush.bf16.msra.mxu0 %v2599
          %2615 = vmatpush.bf16.msra.mxu0 %v2598
          %2616 = vmatpush.bf16.msra.mxu0 %v2597
          %2617 = vmatpush.bf16.msra.mxu0 %v2596
          %2618 = vmatpush.bf16.msra.mxu0 %v2595
          %2619 = vmatmul.bf16.gmra.mxu0 %v2542
          %v2620 = vpop.f32.mrf.mxu0
          %v2621 = vadd.f32 %v2561, %v2620
          %v2622 = vpop.f32.mrf.mxu0
          %2623 = vdwg.mxu0
          %2624 = vst [vmem:[#allocation9] sm:$0x3] %v2621
        $region120: #{vit_forward.1} parent=99 // pred_fallthru
          _
        // Predicated region
        $region121: #{vit_forward.1} parent=99 // pred_check
          %p2625 = pneg %p531
        $region122: #{vit_forward.1} parent=99 // pred_check_branch
          %2627 = sbr.rel (%p2625) target = $region124
        $region123: #{vit_forward.1} parent=99 // pred_region
          %2629 = vsyncadd [#allocation5], 0
          %s2631 = sshll.u32 [#allocation9], 4
          %s2632 = int_to_ptr.vmem [resolvable:$true] %s2631
          %s2633 = sshll.u32 %s20, 4
          %s2634 = int_to_ptr.hbm [resolvable:$true] %s2633
          %2636 = dma.vmem_to_hbm [thread:$0]  %s2632, 32, %s2634, [#allocation5]
        $region124: #{vit_forward.1} parent=99 // pred_fallthru
          _
        // Predicated region
        $region125: #{vit_forward.1} parent=99 // pred_check
          %p2637 = pneg %p531
        $region126: #{vit_forward.1} parent=99 // pred_check_branch
          %2639 = sbr.rel (%p2637) target = $region128
        $region127: #{vit_forward.1} parent=99 // pred_region
          %2641 = dma.done [#allocation5], 32
        $region128: #{vit_forward.1} parent=99 // pred_fallthru
          _
      $region100: #{vit_forward.1} parent=5 // pred_fallthru
        _
      %p2642 = scmp.le.s32.totalorder 2, %s33
      // Predicated region
      $region129: #{vit_forward.1} parent=5 // pred_check
        %p2643 = pneg %p2642
      $region130: #{vit_forward.1} parent=5 // pred_check_branch
        %2645 = sbr.rel (%p2643) target = $region132
      $region131: #{vit_forward.1} parent=5 // pred_region
        %s2646 = ssub.s32 %s33, 2
      $region132: #{vit_forward.1} parent=5 // pred_fallthru
        _
    $region6: #{vit_forward.1} parent=1 // loop_footer
      %s37 = sadd.s32 1, %s33
    $region7: #{vit_forward.1} parent=1 // loop_footer_branch
      %32 = sbr.rel target = $region3
    $region8: #{vit_forward.1} parent=1 // loop_exit
      _
    %2647 = vsyncpa [#allocation4], 1
    %s2648 = scalar_lea.sflag [#allocation4], 1
    %2649 = vsyncpa %s2648, 1
    %2650 = vsyncpa [#allocation7], 1
    %s2651 = scalar_lea.sflag [#allocation7], 1
    %2652 = vsyncpa %s2651, 1
    %2653 = vsyncpa [#allocation5], 1
    %s2654 = scalar_lea.sflag [#allocation5], 1
    %2655 = vsyncpa %s2654, 1

</llo_original>
